<compile_context>
chip_gen: v5e
topology: v5e:2x2
jax: 0.10.0
libtpu: 0.0.40
codegen_flags: <defaults>
</compile_context>

<pallas_src>
from functools import partial

import jax
import jax.numpy as jnp
from jax.experimental import pallas as pl
from jax.experimental.pallas import tpu as pltpu

EPS = 1e-5          # nn.BatchNorm2d default eps
NEG_SLOPE = 0.1     # nn.LeakyReLU(0.1)


def _round_up(x, m):
    return (x + m - 1) // m * m


def _next_pow2(x):
    x = max(int(x), 1)
    return 1 << (x - 1).bit_length() if x > 1 else 1


# ---------------------------------------------------------------------------
# Phase 1: conv (K*K per-tap MXU matmuls from body+halo blocks) + global
# per-channel statistics via masked MXU row-sums and a Chan/Welford merge.
# ---------------------------------------------------------------------------
def _make_conv_stats_kernel(K, stride, Ws, tile_m, halo_p):
    taps = []
    for kh in range(K):
        for kw in range(K):
            ph = (kh % stride) * stride + (kw % stride)          # phase plane
            off = (kh // stride) * Ws + (kw // stride)           # row offset
            taps.append((ph, off))

    def kernel(xb_ref, xh_ref, w_ref, mask_ref,                  # inputs
               y_ref, mean_ref, m2_ref,                          # outputs
               xcat_ref, cnt_ref):                               # scratch
        i = pl.program_id(0)

        @pl.when(i == 0)
        def _():
            mean_ref[...] = jnp.zeros_like(mean_ref)
            m2_ref[...] = jnp.zeros_like(m2_ref)
            cnt_ref[0] = jnp.float32(0.0)

        # Stage body + halo rows of every phase plane into one VMEM buffer so
        # every tap operand is a plain static slice of it.
        xcat_ref[:, :tile_m, :] = xb_ref[...]
        xcat_ref[:, tile_m:, :] = xh_ref[...]

        # Conv: accumulate K*K per-tap matmuls (f32 accumulation on the MXU).
        ph0, off0 = taps[0]
        acc = jnp.dot(xcat_ref[ph0, off0:off0 + tile_m, :], w_ref[0],
                      preferred_element_type=jnp.float32)
        for t in range(1, len(taps)):
            ph, off = taps[t]
            acc = acc + jnp.dot(xcat_ref[ph, off:off + tile_m, :], w_ref[t],
                                preferred_element_type=jnp.float32)
        y_ref[...] = acc.astype(y_ref.dtype)

        # Masked per-tile sums on the MXU (mask excludes junk / padded rows),
        # merged into the resident per-channel stats with Chan's formula.
        mrow = mask_ref[...]                                       # [1, tile_m]
        tsum = jnp.dot(mrow, acc, preferred_element_type=jnp.float32)
        tssq = jnp.dot(mrow, acc * acc, preferred_element_type=jnp.float32)
        nb = jnp.sum(mrow)
        nb_safe = jnp.maximum(nb, 1.0)
        tmean = tsum / nb_safe
        tm2 = tssq - nb_safe * tmean * tmean
        na = cnt_ref[0]
        n_tot = jnp.maximum(na + nb, 1.0)
        delta = tmean - mean_ref[...]
        mean_ref[...] = mean_ref[...] + delta * (nb / n_tot)
        m2_ref[...] = m2_ref[...] + tm2 + delta * delta * (na * nb / n_tot)
        cnt_ref[0] = na + nb

    return kernel


# ---------------------------------------------------------------------------
# Phase 2: folded BatchNorm affine (precomputed scale/shift) + LeakyReLU.
# ---------------------------------------------------------------------------
def _bn_lrelu_kernel(y_ref, scale_ref, shift_ref, o_ref):
    z = y_ref[...].astype(jnp.float32) * scale_ref[...] + shift_ref[...]
    o_ref[...] = jnp.where(z >= 0, z, NEG_SLOPE * z)


@partial(jax.jit,
         static_argnames=("stride", "padding", "tile_m", "tile_m2", "matmul_dtype"))
def cbl_forward_nhwc(x_nhwc, conv_w, gamma, beta, *, stride, padding,
                     tile_m=512, tile_m2=2048, matmul_dtype=jnp.bfloat16):
    """x_nhwc: [N, H, W, Cin]; conv_w: [Cout, Cin, K, K] (PyTorch OIHW).
    Returns [N, Ho, Wo, Cout] f32."""
    N, H, W, Cin = x_nhwc.shape
    Cout, Cin_w, K, K2 = conv_w.shape
    assert Cin_w == Cin and K == K2
    s = int(stride)
    pad = int(padding)

    Ho = (H + 2 * pad - K) // s + 1
    Wo = (W + 2 * pad - K) // s + 1
    ext = (K - 1) // s
    Hs, Ws = Ho + ext, Wo + ext           # phase-plane spatial extents
    P = s * s                             # number of phase planes
    L = Hs * Ws                           # flattened rows per image (incl. junk)
    M_total = N * L
    M_true = N * Ho * Wo                  # real elements per channel (BN stats)
    KK = K * K
    Cout_pad = _round_up(Cout, 128)

    # ---- tiling ------------------------------------------------------------
    halo = ext * Ws + ext                 # largest tap offset (rows of lookahead)
    halo_p = max(16, _next_pow2(halo))    # pow2 so it divides tile_m1
    cap = _round_up(M_total, 128)
    tile_m1 = _round_up(max(128, min(int(tile_m), cap)), 128)
    tile_m1 = _round_up(tile_m1, halo_p)
    t2 = max(128, min(int(tile_m2), cap))
    tile_m2_ = max(tile_m1, (t2 // tile_m1) * tile_m1)   # multiple of tile_m1
    M_pad = _round_up(M_total, tile_m2_)                 # multiple of both tiles
    Mx = M_pad + tile_m1                  # zero tail also covers the last halo
    num_t1 = M_pad // tile_m1
    num_t2 = M_pad // tile_m2_
    halo_blocks = tile_m1 // halo_p

    y_dtype = (jnp.bfloat16
               if jnp.dtype(matmul_dtype) == jnp.dtype(jnp.bfloat16)
               else jnp.float32)

    # ---- phase planes (space-to-batch; one layout pass, no K^2 blowup) ------
    xf = x_nhwc.astype(jnp.float32)
    xp = jnp.pad(xf, ((0, 0), (pad, pad), (pad, pad), (0, 0)))
    eh = max(0, s * Hs - (H + 2 * pad))
    ew = max(0, s * Ws - (W + 2 * pad))
    xp = jnp.pad(xp, ((0, 0), (0, eh), (0, ew), (0, 0)))[:, :s * Hs, :s * Ws, :]
    xph = xp.reshape(N, Hs, s, Ws, s, Cin).transpose(2, 4, 0, 1, 3, 5)
    xph = xph.reshape(P, M_total, Cin)
    xph = jnp.pad(xph, ((0, 0), (0, Mx - M_total), (0, 0))).astype(matmul_dtype)

    # per-tap weights [K*K, Cin, Cout_pad] in (kh, kw) order
    w_taps = jnp.transpose(conv_w.astype(jnp.float32), (2, 3, 1, 0))
    w_taps = w_taps.reshape(KK, Cin, Cout)
    w_taps = jnp.pad(w_taps, ((0, 0), (0, 0), (0, Cout_pad - Cout)))
    w_taps = w_taps.astype(matmul_dtype)

    # validity mask: 1 for real output pixels, 0 for junk columns / pad rows
    mimg = (jnp.arange(Hs) < Ho)[:, None] & (jnp.arange(Ws) < Wo)[None, :]
    mask = jnp.tile(mimg.reshape(1, L), (N, 1)).reshape(1, M_total)
    mask = jnp.pad(mask.astype(jnp.float32), ((0, 0), (0, M_pad - M_total)))

    gamma_p = jnp.pad(gamma.astype(jnp.float32), (0, Cout_pad - Cout))
    beta_p = jnp.pad(beta.astype(jnp.float32), (0, Cout_pad - Cout))

    # ---- VMEM budget (double-buffered blocks + scratch), capped for v7x -----
    dsz = jnp.dtype(matmul_dtype).itemsize
    ysz = jnp.dtype(y_dtype).itemsize
    cin_lane = _round_up(Cin, 128)
    est1 = (2 * P * tile_m1 * cin_lane * dsz
            + 2 * P * halo_p * cin_lane * dsz
            + 2 * KK * _round_up(Cin, 8) * Cout_pad * dsz
            + 2 * 8 * tile_m1 * 4
            + 2 * tile_m1 * Cout_pad * ysz
            + P * (tile_m1 + halo_p) * cin_lane * dsz
            + 4 * tile_m1 * Cout_pad * 4
            + 8 * 8 * Cout_pad * 4)
    est2 = 2 * tile_m2_ * Cout_pad * (ysz + 4) + 8 * 8 * Cout_pad * 4
    vmem_limit = int(min(int(1.25 * max(est1, est2)) + (4 << 20), 56 << 20))

    # ---- phase 1: conv + global stats (sequential reduction axis) -----------
    kernel1 = _make_conv_stats_kernel(K, s, Ws, tile_m1, halo_p)
    y_pad, mean_o, m2_o = pl.pallas_call(
        kernel1,
        out_shape=(jax.ShapeDtypeStruct((M_pad, Cout_pad), y_dtype),
                   jax.ShapeDtypeStruct((1, Cout_pad), jnp.float32),
                   jax.ShapeDtypeStruct((1, Cout_pad), jnp.float32)),
        grid=(num_t1,),
        in_specs=[
            pl.BlockSpec((P, tile_m1, Cin), lambda i: (0, i, 0)),     # body rows
            pl.BlockSpec((P, halo_p, Cin),
                         lambda i: (0, (i + 1) * halo_blocks, 0)),    # halo rows
            pl.BlockSpec((KK, Cin, Cout_pad), lambda i: (0, 0, 0)),   # weights
            pl.BlockSpec((1, tile_m1), lambda i: (0, i)),             # mask row
        ],
        out_specs=(
            pl.BlockSpec((tile_m1, Cout_pad), lambda i: (i, 0)),
            pl.BlockSpec((1, Cout_pad), lambda i: (0, 0)),            # resident
            pl.BlockSpec((1, Cout_pad), lambda i: (0, 0)),            # resident
        ),
        scratch_shapes=[
            pltpu.VMEM((P, tile_m1 + halo_p, Cin), matmul_dtype),
            pltpu.SMEM((1,), jnp.float32),
        ],
        compiler_params=pltpu.CompilerParams(
            dimension_semantics=("arbitrary",),
            vmem_limit_bytes=vmem_limit),
    )(xph, xph, w_taps, mask)

    # ---- fold BN into per-channel scale/shift (tiny [Cout_pad] vectors) -----
    mean = mean_o[0]
    var = jnp.maximum(m2_o[0], 0.0) / float(M_true)      # biased var (PyTorch)
    inv_std = jax.lax.rsqrt(var + EPS)
    scale = (gamma_p * inv_std).reshape(1, Cout_pad)
    shift = (beta_p - mean * gamma_p * inv_std).reshape(1, Cout_pad)

    # ---- phase 2: normalize + LeakyReLU (independent tiles -> "parallel") ---
    alias = {0: 0} if jnp.dtype(y_dtype) == jnp.dtype(jnp.float32) else {}
    out_pad = pl.pallas_call(
        _bn_lrelu_kernel,
        out_shape=jax.ShapeDtypeStruct((M_pad, Cout_pad), jnp.float32),
        grid=(num_t2,),
        in_specs=[
            pl.BlockSpec((tile_m2_, Cout_pad), lambda i: (i, 0)),
            pl.BlockSpec((1, Cout_pad), lambda i: (0, 0)),
            pl.BlockSpec((1, Cout_pad), lambda i: (0, 0)),
        ],
        out_specs=pl.BlockSpec((tile_m2_, Cout_pad), lambda i: (i, 0)),
        input_output_aliases=alias,
        compiler_params=pltpu.CompilerParams(
            dimension_semantics=("parallel",),
            vmem_limit_bytes=vmem_limit),
    )(y_pad, scale, shift)

    # drop junk columns / pad rows / pad channels
    out = out_pad[:M_total].reshape(N, Hs, Ws, Cout_pad)[:, :Ho, :Wo, :Cout]
    return out


def cbl_forward(x_nchw, conv_w, gamma, beta, stride, padding, *,
                tile_m=512, tile_m2=2048, matmul_dtype=jnp.bfloat16):
    """PyTorch-layout convenience wrapper: NCHW in, NCHW out."""
    x_nhwc = jnp.transpose(x_nchw, (0, 2, 3, 1))
    out = cbl_forward_nhwc(x_nhwc, conv_w, gamma, beta,
                           stride=stride, padding=padding,
                           tile_m=tile_m, tile_m2=tile_m2,
                           matmul_dtype=matmul_dtype)
    return jnp.transpose(out, (0, 3, 1, 2))


def cbl_reference(x_nchw, conv_w, gamma, beta, stride, padding):
    """Pure-JAX f32 reference matching the PyTorch module forward."""
    y = jax.lax.conv_general_dilated(
        x_nchw.astype(jnp.float32), conv_w.astype(jnp.float32),
        window_strides=(stride, stride),
        padding=[(padding, padding), (padding, padding)],
        dimension_numbers=("NCHW", "OIHW", "NCHW"))
    mean = jnp.mean(y, axis=(0, 2, 3), keepdims=True)
    var = jnp.mean((y - mean) ** 2, axis=(0, 2, 3), keepdims=True)
    yh = (y - mean) * jax.lax.rsqrt(var + EPS)
    z = yh * gamma.reshape(1, -1, 1, 1) + beta.reshape(1, -1, 1, 1)
    return jnp.where(z >= 0, z, NEG_SLOPE * z)


if __name__ == "__main__":
    key = jax.random.PRNGKey(0)

    def run_case(N, Cin, H, W, Cout, K, stride, padding, case_key, tile_m, tile_m2):
        kx, kw, kg, kb = jax.random.split(case_key, 4)
        x = jax.random.normal(kx, (N, Cin, H, W), dtype=jnp.float32)
        conv_w = jax.random.normal(kw, (Cout, Cin, K, K), dtype=jnp.float32) * 0.1
        gamma = 1.0 + 0.1 * jax.random.normal(kg, (Cout,), dtype=jnp.float32)
        beta = 0.1 * jax.random.normal(kb, (Cout,), dtype=jnp.float32)

        ref = cbl_reference(x, conv_w, gamma, beta, stride, padding)

        # f32 MXU path: must match the module numerics tightly.
        out_f32 = jax.block_until_ready(
            cbl_forward(x, conv_w, gamma, beta, stride, padding,
                        tile_m=tile_m, tile_m2=tile_m2, matmul_dtype=jnp.float32))
        assert out_f32.shape == ref.shape, (out_f32.shape, ref.shape)
        err32 = float(jnp.max(jnp.abs(out_f32 - ref)))
        assert jnp.allclose(out_f32, ref, atol=2e-4, rtol=2e-4), err32

        # bf16 fast path (bf16 MXU inputs + bf16 intermediate y, f32 stats/BN).
        out_bf16 = jax.block_until_ready(
            cbl_forward(x, conv_w, gamma, beta, stride, padding,
                        tile_m=tile_m, tile_m2=tile_m2, matmul_dtype=jnp.bfloat16))
        errbf = float(jnp.max(jnp.abs(out_bf16 - ref)))
        assert jnp.allclose(out_bf16, ref, atol=5e-2, rtol=5e-2), errbf

    k1, k2, k3 = jax.random.split(key, 3)
    # CBL(4, 8, 3, 1, 1), x [2, 4, 16, 16]: 6 phase-1 tiles / 3 phase-2 tiles
    # -> exercises halo blocks, junk-row masking and the cross-tile Welford merge.
    run_case(2, 4, 16, 16, 8, 3, 1, 1, k1, tile_m=128, tile_m2=256)
    # stride 2, odd sizes: exercises the stride^2 phase (space-to-batch) path.
    run_case(2, 3, 13, 13, 5, 3, 2, 1, k2, tile_m=128, tile_m2=128)
    # 1x1 conv, no padding.
    run_case(2, 16, 8, 8, 32, 1, 1, 0, k3, tile_m=128, tile_m2=128)

    print("KERNEL_OK")
</pallas_src>

<mosaic_0001>
module attributes {stable_mosaic.version = 11 : i64} {
  func.func @kernel(%arg0: i32, %arg1: memref<1x128x4xf32, #tpu.memory_space<vmem>>, %arg2: memref<1x64x4xf32, #tpu.memory_space<vmem>>, %arg3: memref<9x4x128xf32, #tpu.memory_space<vmem>>, %arg4: memref<1x128xf32, #tpu.memory_space<vmem>>, %arg5: memref<128x128xf32, #tpu.memory_space<vmem>>, %arg6: memref<1x128xf32, #tpu.memory_space<vmem>>, %arg7: memref<1x128xf32, #tpu.memory_space<vmem>>, %arg8: memref<1x192x4xf32, #tpu.memory_space<vmem>>, %arg9: memref<1xf32, #tpu.memory_space<smem>>) attributes {dimension_semantics = [#tpu.dimension_semantics<arbitrary>], iteration_bounds = array<i64: 6>, scalar_prefetch = 0 : i64, scratch_operands = 2 : i64, tpu.core_type = #tpu.core_type<tc>, window_params = [{transform_indices = @transform_0, window_bounds = array<i64: 1, 128, 4>}, {transform_indices = @transform_1, window_bounds = array<i64: 1, 64, 4>}, {pipeline_mode = #tpu.pipeline_mode<synchronous>, transform_indices = @transform_2, window_bounds = array<i64: 9, 4, 128>}, {transform_indices = @transform_3, window_bounds = array<i64: 1, 128>}, {transform_indices = @transform_4, window_bounds = array<i64: 128, 128>}, {pipeline_mode = #tpu.pipeline_mode<synchronous>, transform_indices = @transform_5, window_bounds = array<i64: 1, 128>}, {pipeline_mode = #tpu.pipeline_mode<synchronous>, transform_indices = @transform_6, window_bounds = array<i64: 1, 128>}]} {
    %c0_i32 = arith.constant 0 : i32
    %0 = arith.cmpi eq, %arg0, %c0_i32 : i32
    %1 = arith.extui %0 : i1 to i32
    %c0_i32_0 = arith.constant 0 : i32
    %2 = arith.cmpi ne, %1, %c0_i32_0 : i32
    scf.if %2 {
      %cst_80 = arith.constant 0.000000e+00 : f32
      %98 = vector.broadcast %cst_80 : f32 to vector<1x128xf32>
      %c0_81 = arith.constant 0 : index
      %c0_82 = arith.constant 0 : index
      %99 = vector.load %arg6[%c0_81, %c0_82] : memref<1x128xf32, #tpu.memory_space<vmem>>, vector<1x128xf32>
      tpu.vector_store %arg6[%c0_81, %c0_82], %98 {strides = array<i32>} : memref<1x128xf32, #tpu.memory_space<vmem>>, vector<1x128xf32>,
      %cst_83 = arith.constant 0.000000e+00 : f32
      %100 = vector.broadcast %cst_83 : f32 to vector<1x128xf32>
      %c0_84 = arith.constant 0 : index
      %c0_85 = arith.constant 0 : index
      %101 = vector.load %arg7[%c0_84, %c0_85] : memref<1x128xf32, #tpu.memory_space<vmem>>, vector<1x128xf32>
      tpu.vector_store %arg7[%c0_84, %c0_85], %100 {strides = array<i32>} : memref<1x128xf32, #tpu.memory_space<vmem>>, vector<1x128xf32>,
      %cst_86 = arith.constant 0.000000e+00 : f32
      %c0_87 = arith.constant 0 : index
      %102 = memref.load %arg9[%c0_87] : memref<1xf32, #tpu.memory_space<smem>>
      memref.store %cst_86, %arg9[%c0_87] : memref<1xf32, #tpu.memory_space<smem>>
    } else {
    }
    %c0 = arith.constant 0 : index
    %c0_1 = arith.constant 0 : index
    %c0_2 = arith.constant 0 : index
    %3 = vector.load %arg1[%c0, %c0_1, %c0_2] : memref<1x128x4xf32, #tpu.memory_space<vmem>>, vector<1x128x4xf32>
    %c0_3 = arith.constant 0 : index
    %c0_4 = arith.constant 0 : index
    %c0_5 = arith.constant 0 : index
    %4 = vector.load %arg8[%c0_3, %c0_4, %c0_5] : memref<1x192x4xf32, #tpu.memory_space<vmem>>, vector<1x128x4xf32>
    tpu.vector_store %arg8[%c0_3, %c0_4, %c0_5], %3 {strides = array<i32>} : memref<1x192x4xf32, #tpu.memory_space<vmem>>, vector<1x128x4xf32>,
    %c0_6 = arith.constant 0 : index
    %c0_7 = arith.constant 0 : index
    %c0_8 = arith.constant 0 : index
    %5 = vector.load %arg2[%c0_6, %c0_7, %c0_8] : memref<1x64x4xf32, #tpu.memory_space<vmem>>, vector<1x64x4xf32>
    %c0_9 = arith.constant 0 : index
    %c128 = arith.constant 128 : index
    %c0_10 = arith.constant 0 : index
    %6 = vector.load %arg8[%c0_9, %c128, %c0_10] : memref<1x192x4xf32, #tpu.memory_space<vmem>>, vector<1x64x4xf32>
    tpu.vector_store %arg8[%c0_9, %c128, %c0_10], %5 {strides = array<i32>} : memref<1x192x4xf32, #tpu.memory_space<vmem>>, vector<1x64x4xf32>,
    %c0_11 = arith.constant 0 : index
    %c0_12 = arith.constant 0 : index
    %c0_13 = arith.constant 0 : index
    %7 = vector.load %arg8[%c0_11, %c0_12, %c0_13] : memref<1x192x4xf32, #tpu.memory_space<vmem>>, vector<1x128x4xf32>
    %8 = vector.shape_cast %7 : vector<1x128x4xf32> to vector<128x4xf32>
    %c0_14 = arith.constant 0 : index
    %c0_15 = arith.constant 0 : index
    %c0_16 = arith.constant 0 : index
    %9 = vector.load %arg3[%c0_14, %c0_15, %c0_16] : memref<9x4x128xf32, #tpu.memory_space<vmem>>, vector<1x4x128xf32>
    %10 = vector.shape_cast %9 : vector<1x4x128xf32> to vector<4x128xf32>
    %cst = arith.constant dense<0.000000e+00> : vector<128x128xf32>
    %11 = tpu.matmul %8, %10, %cst {dimension_numbers = #tpu.dot_dimension_numbers<[1], [0], [0], [1], [0, 0, 1, 1], [], []>} : vector<128x4xf32>, vector<4x128xf32>, vector<128x128xf32> -> vector<128x128xf32>
    %c0_17 = arith.constant 0 : index
    %c1 = arith.constant 1 : index
    %c0_18 = arith.constant 0 : index
    %12 = vector.load %arg8[%c0_17, %c1, %c0_18] : memref<1x192x4xf32, #tpu.memory_space<vmem>>, vector<1x128x4xf32>
    %13 = vector.shape_cast %12 : vector<1x128x4xf32> to vector<128x4xf32>
    %c1_19 = arith.constant 1 : index
    %c0_20 = arith.constant 0 : index
    %c0_21 = arith.constant 0 : index
    %14 = vector.load %arg3[%c1_19, %c0_20, %c0_21] : memref<9x4x128xf32, #tpu.memory_space<vmem>>, vector<1x4x128xf32>
    %15 = vector.shape_cast %14 : vector<1x4x128xf32> to vector<4x128xf32>
    %cst_22 = arith.constant dense<0.000000e+00> : vector<128x128xf32>
    %16 = tpu.matmul %13, %15, %cst_22 {dimension_numbers = #tpu.dot_dimension_numbers<[1], [0], [0], [1], [0, 0, 1, 1], [], []>} : vector<128x4xf32>, vector<4x128xf32>, vector<128x128xf32> -> vector<128x128xf32>
    %17 = arith.addf %11, %16 : vector<128x128xf32>
    %c0_23 = arith.constant 0 : index
    %c2 = arith.constant 2 : index
    %c0_24 = arith.constant 0 : index
    %18 = vector.load %arg8[%c0_23, %c2, %c0_24] : memref<1x192x4xf32, #tpu.memory_space<vmem>>, vector<1x128x4xf32>
    %19 = vector.shape_cast %18 : vector<1x128x4xf32> to vector<128x4xf32>
    %c2_25 = arith.constant 2 : index
    %c0_26 = arith.constant 0 : index
    %c0_27 = arith.constant 0 : index
    %20 = vector.load %arg3[%c2_25, %c0_26, %c0_27] : memref<9x4x128xf32, #tpu.memory_space<vmem>>, vector<1x4x128xf32>
    %21 = vector.shape_cast %20 : vector<1x4x128xf32> to vector<4x128xf32>
    %cst_28 = arith.constant dense<0.000000e+00> : vector<128x128xf32>
    %22 = tpu.matmul %19, %21, %cst_28 {dimension_numbers = #tpu.dot_dimension_numbers<[1], [0], [0], [1], [0, 0, 1, 1], [], []>} : vector<128x4xf32>, vector<4x128xf32>, vector<128x128xf32> -> vector<128x128xf32>
    %23 = arith.addf %17, %22 : vector<128x128xf32>
    %c0_29 = arith.constant 0 : index
    %c18 = arith.constant 18 : index
    %c0_30 = arith.constant 0 : index
    %24 = vector.load %arg8[%c0_29, %c18, %c0_30] : memref<1x192x4xf32, #tpu.memory_space<vmem>>, vector<1x128x4xf32>
    %25 = vector.shape_cast %24 : vector<1x128x4xf32> to vector<128x4xf32>
    %c3 = arith.constant 3 : index
    %c0_31 = arith.constant 0 : index
    %c0_32 = arith.constant 0 : index
    %26 = vector.load %arg3[%c3, %c0_31, %c0_32] : memref<9x4x128xf32, #tpu.memory_space<vmem>>, vector<1x4x128xf32>
    %27 = vector.shape_cast %26 : vector<1x4x128xf32> to vector<4x128xf32>
    %cst_33 = arith.constant dense<0.000000e+00> : vector<128x128xf32>
    %28 = tpu.matmul %25, %27, %cst_33 {dimension_numbers = #tpu.dot_dimension_numbers<[1], [0], [0], [1], [0, 0, 1, 1], [], []>} : vector<128x4xf32>, vector<4x128xf32>, vector<128x128xf32> -> vector<128x128xf32>
    %29 = arith.addf %23, %28 : vector<128x128xf32>
    %c0_34 = arith.constant 0 : index
    %c19 = arith.constant 19 : index
    %c0_35 = arith.constant 0 : index
    %30 = vector.load %arg8[%c0_34, %c19, %c0_35] : memref<1x192x4xf32, #tpu.memory_space<vmem>>, vector<1x128x4xf32>
    %31 = vector.shape_cast %30 : vector<1x128x4xf32> to vector<128x4xf32>
    %c4 = arith.constant 4 : index
    %c0_36 = arith.constant 0 : index
    %c0_37 = arith.constant 0 : index
    %32 = vector.load %arg3[%c4, %c0_36, %c0_37] : memref<9x4x128xf32, #tpu.memory_space<vmem>>, vector<1x4x128xf32>
    %33 = vector.shape_cast %32 : vector<1x4x128xf32> to vector<4x128xf32>
    %cst_38 = arith.constant dense<0.000000e+00> : vector<128x128xf32>
    %34 = tpu.matmul %31, %33, %cst_38 {dimension_numbers = #tpu.dot_dimension_numbers<[1], [0], [0], [1], [0, 0, 1, 1], [], []>} : vector<128x4xf32>, vector<4x128xf32>, vector<128x128xf32> -> vector<128x128xf32>
    %35 = arith.addf %29, %34 : vector<128x128xf32>
    %c0_39 = arith.constant 0 : index
    %c20 = arith.constant 20 : index
    %c0_40 = arith.constant 0 : index
    %36 = vector.load %arg8[%c0_39, %c20, %c0_40] : memref<1x192x4xf32, #tpu.memory_space<vmem>>, vector<1x128x4xf32>
    %37 = vector.shape_cast %36 : vector<1x128x4xf32> to vector<128x4xf32>
    %c5 = arith.constant 5 : index
    %c0_41 = arith.constant 0 : index
    %c0_42 = arith.constant 0 : index
    %38 = vector.load %arg3[%c5, %c0_41, %c0_42] : memref<9x4x128xf32, #tpu.memory_space<vmem>>, vector<1x4x128xf32>
    %39 = vector.shape_cast %38 : vector<1x4x128xf32> to vector<4x128xf32>
    %cst_43 = arith.constant dense<0.000000e+00> : vector<128x128xf32>
    %40 = tpu.matmul %37, %39, %cst_43 {dimension_numbers = #tpu.dot_dimension_numbers<[1], [0], [0], [1], [0, 0, 1, 1], [], []>} : vector<128x4xf32>, vector<4x128xf32>, vector<128x128xf32> -> vector<128x128xf32>
    %41 = arith.addf %35, %40 : vector<128x128xf32>
    %c0_44 = arith.constant 0 : index
    %c36 = arith.constant 36 : index
    %c0_45 = arith.constant 0 : index
    %42 = vector.load %arg8[%c0_44, %c36, %c0_45] : memref<1x192x4xf32, #tpu.memory_space<vmem>>, vector<1x128x4xf32>
    %43 = vector.shape_cast %42 : vector<1x128x4xf32> to vector<128x4xf32>
    %c6 = arith.constant 6 : index
    %c0_46 = arith.constant 0 : index
    %c0_47 = arith.constant 0 : index
    %44 = vector.load %arg3[%c6, %c0_46, %c0_47] : memref<9x4x128xf32, #tpu.memory_space<vmem>>, vector<1x4x128xf32>
    %45 = vector.shape_cast %44 : vector<1x4x128xf32> to vector<4x128xf32>
    %cst_48 = arith.constant dense<0.000000e+00> : vector<128x128xf32>
    %46 = tpu.matmul %43, %45, %cst_48 {dimension_numbers = #tpu.dot_dimension_numbers<[1], [0], [0], [1], [0, 0, 1, 1], [], []>} : vector<128x4xf32>, vector<4x128xf32>, vector<128x128xf32> -> vector<128x128xf32>
    %47 = arith.addf %41, %46 : vector<128x128xf32>
    %c0_49 = arith.constant 0 : index
    %c37 = arith.constant 37 : index
    %c0_50 = arith.constant 0 : index
    %48 = vector.load %arg8[%c0_49, %c37, %c0_50] : memref<1x192x4xf32, #tpu.memory_space<vmem>>, vector<1x128x4xf32>
    %49 = vector.shape_cast %48 : vector<1x128x4xf32> to vector<128x4xf32>
    %c7 = arith.constant 7 : index
    %c0_51 = arith.constant 0 : index
    %c0_52 = arith.constant 0 : index
    %50 = vector.load %arg3[%c7, %c0_51, %c0_52] : memref<9x4x128xf32, #tpu.memory_space<vmem>>, vector<1x4x128xf32>
    %51 = vector.shape_cast %50 : vector<1x4x128xf32> to vector<4x128xf32>
    %cst_53 = arith.constant dense<0.000000e+00> : vector<128x128xf32>
    %52 = tpu.matmul %49, %51, %cst_53 {dimension_numbers = #tpu.dot_dimension_numbers<[1], [0], [0], [1], [0, 0, 1, 1], [], []>} : vector<128x4xf32>, vector<4x128xf32>, vector<128x128xf32> -> vector<128x128xf32>
    %53 = arith.addf %47, %52 : vector<128x128xf32>
    %c0_54 = arith.constant 0 : index
    %c38 = arith.constant 38 : index
    %c0_55 = arith.constant 0 : index
    %54 = vector.load %arg8[%c0_54, %c38, %c0_55] : memref<1x192x4xf32, #tpu.memory_space<vmem>>, vector<1x128x4xf32>
    %55 = vector.shape_cast %54 : vector<1x128x4xf32> to vector<128x4xf32>
    %c8 = arith.constant 8 : index
    %c0_56 = arith.constant 0 : index
    %c0_57 = arith.constant 0 : index
    %56 = vector.load %arg3[%c8, %c0_56, %c0_57] : memref<9x4x128xf32, #tpu.memory_space<vmem>>, vector<1x4x128xf32>
    %57 = vector.shape_cast %56 : vector<1x4x128xf32> to vector<4x128xf32>
    %cst_58 = arith.constant dense<0.000000e+00> : vector<128x128xf32>
    %58 = tpu.matmul %55, %57, %cst_58 {dimension_numbers = #tpu.dot_dimension_numbers<[1], [0], [0], [1], [0, 0, 1, 1], [], []>} : vector<128x4xf32>, vector<4x128xf32>, vector<128x128xf32> -> vector<128x128xf32>
    %59 = arith.addf %53, %58 : vector<128x128xf32>
    %c0_59 = arith.constant 0 : index
    %c0_60 = arith.constant 0 : index
    %60 = vector.load %arg5[%c0_59, %c0_60] : memref<128x128xf32, #tpu.memory_space<vmem>>, vector<128x128xf32>
    tpu.vector_store %arg5[%c0_59, %c0_60], %59 {strides = array<i32>} : memref<128x128xf32, #tpu.memory_space<vmem>>, vector<128x128xf32>,
    %c0_61 = arith.constant 0 : index
    %c0_62 = arith.constant 0 : index
    %61 = vector.load %arg4[%c0_61, %c0_62] : memref<1x128xf32, #tpu.memory_space<vmem>>, vector<1x128xf32>
    %cst_63 = arith.constant dense<0.000000e+00> : vector<1x128xf32>
    %62 = tpu.matmul %61, %59, %cst_63 {dimension_numbers = #tpu.dot_dimension_numbers<[1], [0], [0], [1], [0, 0, 1, 1], [], []>} : vector<1x128xf32>, vector<128x128xf32>, vector<1x128xf32> -> vector<1x128xf32>
    %63 = arith.mulf %59, %59 : vector<128x128xf32>
    %cst_64 = arith.constant dense<0.000000e+00> : vector<1x128xf32>
    %64 = tpu.matmul %61, %63, %cst_64 {dimension_numbers = #tpu.dot_dimension_numbers<[1], [0], [0], [1], [0, 0, 1, 1], [], []>} : vector<1x128xf32>, vector<128x128xf32>, vector<1x128xf32> -> vector<1x128xf32>
    %65 = vector.shape_cast %61 : vector<1x128xf32> to vector<1x1x128xf32>
    %cst_65 = arith.constant dense<0.000000e+00> : vector<1xf32>
    %66 = vector.multi_reduction <add>, %65, %cst_65 [1, 2] : vector<1x1x128xf32> to vector<1xf32>
    %67 = vector.shape_cast %66 : vector<1xf32> to vector<1x1x1xf32>
    %68 = vector.extract %67[0, 0, 0] : f32 from vector<1x1x1xf32>
    %cst_66 = arith.constant 1.000000e+00 : f32
    %69 = arith.maximumf %68, %cst_66 : f32
    %70 = vector.broadcast %69 : f32 to vector<1x128xf32>
    %71 = arith.divf %62, %70 : vector<1x128xf32>
    %72 = vector.broadcast %69 : f32 to vector<1x128xf32>
    %73 = arith.mulf %72, %71 : vector<1x128xf32>
    %74 = arith.mulf %73, %71 : vector<1x128xf32>
    %75 = arith.subf %64, %74 : vector<1x128xf32>
    %c0_67 = arith.constant 0 : index
    %76 = memref.load %arg9[%c0_67] : memref<1xf32, #tpu.memory_space<smem>>
    %77 = arith.addf %76, %68 : f32
    %cst_68 = arith.constant 1.000000e+00 : f32
    %78 = arith.maximumf %77, %cst_68 : f32
    %c0_69 = arith.constant 0 : index
    %c0_70 = arith.constant 0 : index
    %79 = vector.load %arg6[%c0_69, %c0_70] : memref<1x128xf32, #tpu.memory_space<vmem>>, vector<1x128xf32>
    %80 = arith.subf %71, %79 : vector<1x128xf32>
    %c0_71 = arith.constant 0 : index
    %c0_72 = arith.constant 0 : index
    %81 = vector.load %arg6[%c0_71, %c0_72] : memref<1x128xf32, #tpu.memory_space<vmem>>, vector<1x128xf32>
    %82 = arith.divf %68, %78 : f32
    %83 = vector.broadcast %82 : f32 to vector<1x128xf32>
    %84 = arith.mulf %80, %83 : vector<1x128xf32>
    %85 = arith.addf %81, %84 : vector<1x128xf32>
    %c0_73 = arith.constant 0 : index
    %c0_74 = arith.constant 0 : index
    %86 = vector.load %arg6[%c0_73, %c0_74] : memref<1x128xf32, #tpu.memory_space<vmem>>, vector<1x128xf32>
    tpu.vector_store %arg6[%c0_73, %c0_74], %85 {strides = array<i32>} : memref<1x128xf32, #tpu.memory_space<vmem>>, vector<1x128xf32>,
    %c0_75 = arith.constant 0 : index
    %c0_76 = arith.constant 0 : index
    %87 = vector.load %arg7[%c0_75, %c0_76] : memref<1x128xf32, #tpu.memory_space<vmem>>, vector<1x128xf32>
    %88 = arith.addf %87, %75 : vector<1x128xf32>
    %89 = arith.mulf %80, %80 : vector<1x128xf32>
    %90 = arith.mulf %76, %68 : f32
    %91 = arith.divf %90, %78 : f32
    %92 = vector.broadcast %91 : f32 to vector<1x128xf32>
    %93 = arith.mulf %89, %92 : vector<1x128xf32>
    %94 = arith.addf %88, %93 : vector<1x128xf32>
    %c0_77 = arith.constant 0 : index
    %c0_78 = arith.constant 0 : index
    %95 = vector.load %arg7[%c0_77, %c0_78] : memref<1x128xf32, #tpu.memory_space<vmem>>, vector<1x128xf32>
    tpu.vector_store %arg7[%c0_77, %c0_78], %94 {strides = array<i32>} : memref<1x128xf32, #tpu.memory_space<vmem>>, vector<1x128xf32>,
    %96 = arith.addf %76, %68 : f32
    %c0_79 = arith.constant 0 : index
    %97 = memref.load %arg9[%c0_79] : memref<1xf32, #tpu.memory_space<smem>>
    memref.store %96, %arg9[%c0_79] : memref<1xf32, #tpu.memory_space<smem>>
    return
  }
  func.func @transform_0(%arg0: i32) -> (i32, i32, i32) {
    %c0_i32 = arith.constant 0 : i32
    %c0_i32_0 = arith.constant 0 : i32
    %c0_i32_1 = arith.constant 0 : i32
    return %c0_i32, %arg0, %c0_i32_0 : i32, i32, i32
  }
  func.func @transform_1(%arg0: i32) -> (i32, i32, i32) {
    %c1_i32 = arith.constant 1 : i32
    %0 = arith.addi %arg0, %c1_i32 : i32
    %c2_i32 = arith.constant 2 : i32
    %1 = arith.muli %0, %c2_i32 : i32
    %c0_i32 = arith.constant 0 : i32
    %c0_i32_0 = arith.constant 0 : i32
    %c0_i32_1 = arith.constant 0 : i32
    return %c0_i32, %1, %c0_i32_0 : i32, i32, i32
  }
  func.func @transform_2(%arg0: i32) -> (i32, i32, i32) {
    %c0_i32 = arith.constant 0 : i32
    %c0_i32_0 = arith.constant 0 : i32
    %c0_i32_1 = arith.constant 0 : i32
    %c0_i32_2 = arith.constant 0 : i32
    return %c0_i32, %c0_i32_0, %c0_i32_1 : i32, i32, i32
  }
  func.func @transform_3(%arg0: i32) -> (i32, i32) {
    %c0_i32 = arith.constant 0 : i32
    %c0_i32_0 = arith.constant 0 : i32
    return %c0_i32, %arg0 : i32, i32
  }
  func.func @transform_4(%arg0: i32) -> (i32, i32) {
    %c0_i32 = arith.constant 0 : i32
    %c0_i32_0 = arith.constant 0 : i32
    return %arg0, %c0_i32 : i32, i32
  }
  func.func @transform_5(%arg0: i32) -> (i32, i32) {
    %c0_i32 = arith.constant 0 : i32
    %c0_i32_0 = arith.constant 0 : i32
    %c0_i32_1 = arith.constant 0 : i32
    return %c0_i32, %c0_i32_0 : i32, i32
  }
  func.func @transform_6(%arg0: i32) -> (i32, i32) {
    %c0_i32 = arith.constant 0 : i32
    %c0_i32_0 = arith.constant 0 : i32
    %c0_i32_1 = arith.constant 0 : i32
    return %c0_i32, %c0_i32_0 : i32, i32
  }
}

module attributes {stable_mosaic.version = 11 : i64} {
  func.func @_bn_lrelu_kernel(%arg0: i32, %arg1: memref<256x128xf32, #tpu.memory_space<vmem>>, %arg2: memref<1x128xf32, #tpu.memory_space<vmem>>, %arg3: memref<1x128xf32, #tpu.memory_space<vmem>>, %arg4: memref<256x128xf32, #tpu.memory_space<vmem>>) attributes {dimension_semantics = [#tpu.dimension_semantics<parallel>], iteration_bounds = array<i64: 3>, scalar_prefetch = 0 : i64, scratch_operands = 0 : i64, tpu.core_type = #tpu.core_type<tc>, window_params = [{transform_indices = @transform_0, window_bounds = array<i64: 256, 128>}, {pipeline_mode = #tpu.pipeline_mode<synchronous>, transform_indices = @transform_1, window_bounds = array<i64: 1, 128>}, {pipeline_mode = #tpu.pipeline_mode<synchronous>, transform_indices = @transform_2, window_bounds = array<i64: 1, 128>}, {transform_indices = @transform_3, window_bounds = array<i64: 256, 128>}]} {
    %c0 = arith.constant 0 : index
    %c0_0 = arith.constant 0 : index
    %0 = vector.load %arg1[%c0, %c0_0] : memref<256x128xf32, #tpu.memory_space<vmem>>, vector<256x128xf32>
    %c0_1 = arith.constant 0 : index
    %c0_2 = arith.constant 0 : index
    %1 = vector.load %arg2[%c0_1, %c0_2] : memref<1x128xf32, #tpu.memory_space<vmem>>, vector<1x128xf32>
    %2 = vector.broadcast %1 : vector<1x128xf32> to vector<256x128xf32>
    %3 = arith.mulf %0, %2 : vector<256x128xf32>
    %c0_3 = arith.constant 0 : index
    %c0_4 = arith.constant 0 : index
    %4 = vector.load %arg3[%c0_3, %c0_4] : memref<1x128xf32, #tpu.memory_space<vmem>>, vector<1x128xf32>
    %5 = vector.broadcast %4 : vector<1x128xf32> to vector<256x128xf32>
    %6 = arith.addf %3, %5 : vector<256x128xf32>
    %cst = arith.constant 0.000000e+00 : f32
    %7 = vector.broadcast %cst : f32 to vector<256x128xf32>
    %8 = arith.cmpf oge, %6, %7 : vector<256x128xf32>
    %cst_5 = arith.constant 1.000000e-01 : f32
    %9 = vector.broadcast %cst_5 : f32 to vector<256x128xf32>
    %10 = arith.mulf %9, %6 : vector<256x128xf32>
    %11 = arith.select %8, %6, %10 : vector<256x128xi1>, vector<256x128xf32>
    %c0_6 = arith.constant 0 : index
    %c0_7 = arith.constant 0 : index
    %12 = vector.load %arg4[%c0_6, %c0_7] : memref<256x128xf32, #tpu.memory_space<vmem>>, vector<256x128xf32>
    tpu.vector_store %arg4[%c0_6, %c0_7], %11 {strides = array<i32>} : memref<256x128xf32, #tpu.memory_space<vmem>>, vector<256x128xf32>,
    return
  }
  func.func @transform_0(%arg0: i32) -> (i32, i32) {
    %c0_i32 = arith.constant 0 : i32
    %c0_i32_0 = arith.constant 0 : i32
    return %arg0, %c0_i32 : i32, i32
  }
  func.func @transform_1(%arg0: i32) -> (i32, i32) {
    %c0_i32 = arith.constant 0 : i32
    %c0_i32_0 = arith.constant 0 : i32
    %c0_i32_1 = arith.constant 0 : i32
    return %c0_i32, %c0_i32_0 : i32, i32
  }
  func.func @transform_2(%arg0: i32) -> (i32, i32) {
    %c0_i32 = arith.constant 0 : i32
    %c0_i32_0 = arith.constant 0 : i32
    %c0_i32_1 = arith.constant 0 : i32
    return %c0_i32, %c0_i32_0 : i32, i32
  }
  func.func @transform_3(%arg0: i32) -> (i32, i32) {
    %c0_i32 = arith.constant 0 : i32
    %c0_i32_0 = arith.constant 0 : i32
    return %arg0, %c0_i32 : i32, i32
  }
}

</mosaic_0001>

<llo_original>
// kernel: cbl_forward_nhwc.3
$region0: #{cbl_forward_nhwc.3}
  #allocation0 [shape = 'u32[]', space=smem, size = 0x4, offset = 0x4, fixed_abs, tag = 'smem constant byte address 0x4 - core index']
  #allocation1 [shape = 'u32[72,128]{1,0:T(1,128)}', space=vmem, size = 0x9000, scoped, tag = 'internal scratch']
  %s0 = inlined_call_operand.vmem [shape: f32[768,128], index: 0, kind: input, shape index: {}, may-alias: {0,3}]
  %s1 = inlined_call_operand.vmem [shape: f32[1,128], index: 1, kind: input, shape index: {}]
  %s2 = inlined_call_operand.vmem [shape: f32[1,128], index: 2, kind: input, shape index: {}]
  %s3 = inlined_call_operand.vmem [shape: f32[768,128], index: 3, kind: output, shape index: {}, may-alias: {0,3}]
  %s4 = sld [smem:[#allocation0]]
  $region45: #{cbl_forward_nhwc.3} parent=0
    _
  %s6 = ssub.s32 1, %s4
  %s7 = scalar_select 0, %s6, %s4
  loop: start=0, step=1, limit=5
  $region2: #{cbl_forward_nhwc.3} parent=0 // loop_pre_header
    _
  $region3: #{cbl_forward_nhwc.3} parent=0 // loop_header
    %s9 = sphi 0, %s13
    %p10 = scmp.ge.s32.totalorder %s9, 5
    %s19 = sphi 0, %s21
    %s22 = sphi 0, %s19
    %s23 = sphi 0, %s22
    %s39 = sphi 0, %s23
    %s43 = sphi 0, %s43
    %s45 = sphi 0, %s43
    %s46 = sphi 0, %s45
    %s60 = sphi 0, %s46
    %s64 = sphi 0, %s64
    %s66 = sphi 0, %s64
    %s67 = sphi 0, %s66
    %s81 = sphi 0, %s67
    %s87 = sphi 0, %s89
    %s90 = sphi 0, %s87
    %s91 = sphi 0, %s90
    %s107 = sphi 0, %s91
  $region4: #{cbl_forward_nhwc.3} parent=0 // loop_header_branch
    %12 = sbr.rel (%p10) target = $region8
  $region5: #{cbl_forward_nhwc.3} parent=0 // loop_body
    %s14 = ssub.s32 %s9, 1
    %s15 = ssub.s32 %s9, 2
    %s16 = sadd.s32 %s9, 1
    %s17 = ssub.s32 %s9, %s16
    %p18 = scmp.eq.s32.totalorder %s17, 0
    %s20 = sadd.s32 %s19, 1
    %s21 = scalar_select %p18, %s19, %s20
    %p24 = pneg %p18
    %p25 = scmp.eq.s32.totalorder %s9, 2
    %p26 = por %p24, %p25
    %p27 = scmp.ne.s32.totalorder %s19, %s22
    %p28 = scmp.eq.s32.totalorder %s9, 0
    %p29 = por %p27, %p28
    %p30 = scmp.ne.s32.totalorder %s19, %s22
    %p31 = scmp.eq.s32.totalorder %s14, 2
    %p32 = por %p30, %p31
    %p33 = scmp.ne.s32.totalorder %s22, %s23
    %p34 = scmp.eq.s32.totalorder %s14, 0
    %p35 = por %p33, %p34
    %p36 = scmp.ne.s32.totalorder %s22, %s23
    %p37 = scmp.eq.s32.totalorder %s15, 2
    %p38 = por %p36, %p37
    %p40 = scmp.ne.s32.totalorder %s23, %s39
    %p41 = scmp.eq.s32.totalorder %s15, 0
    %p42 = por %p40, %p41
    %s44 = sadd.s32 %s43, 1
    %p47 = scmp.eq.s32.totalorder %s9, 2
    %p48 = scmp.ne.s32.totalorder %s43, %s45
    %p49 = scmp.eq.s32.totalorder %s9, 0
    %p50 = por %p48, %p49
    %p51 = scmp.ne.s32.totalorder %s43, %s45
    %p52 = scmp.eq.s32.totalorder %s14, 2
    %p53 = por %p51, %p52
    %p54 = scmp.ne.s32.totalorder %s45, %s46
    %p55 = scmp.eq.s32.totalorder %s14, 0
    %p56 = por %p54, %p55
    %p57 = scmp.ne.s32.totalorder %s45, %s46
    %p58 = scmp.eq.s32.totalorder %s15, 2
    %p59 = por %p57, %p58
    %p61 = scmp.ne.s32.totalorder %s46, %s60
    %p62 = scmp.eq.s32.totalorder %s15, 0
    %p63 = por %p61, %p62
    %s65 = sadd.s32 %s64, 1
    %p68 = scmp.eq.s32.totalorder %s9, 2
    %p69 = scmp.ne.s32.totalorder %s64, %s66
    %p70 = scmp.eq.s32.totalorder %s9, 0
    %p71 = por %p69, %p70
    %p72 = scmp.ne.s32.totalorder %s64, %s66
    %p73 = scmp.eq.s32.totalorder %s14, 2
    %p74 = por %p72, %p73
    %p75 = scmp.ne.s32.totalorder %s66, %s67
    %p76 = scmp.eq.s32.totalorder %s14, 0
    %p77 = por %p75, %p76
    %p78 = scmp.ne.s32.totalorder %s66, %s67
    %p79 = scmp.eq.s32.totalorder %s15, 2
    %p80 = por %p78, %p79
    %p82 = scmp.ne.s32.totalorder %s67, %s81
    %p83 = scmp.eq.s32.totalorder %s15, 0
    %p84 = por %p82, %p83
    %s85 = ssub.s32 %s9, %s16
    %p86 = scmp.eq.s32.totalorder %s85, 0
    %s88 = sadd.s32 %s87, 1
    %s89 = scalar_select %p86, %s87, %s88
    %p92 = pneg %p86
    %p93 = scmp.eq.s32.totalorder %s9, 2
    %p94 = por %p92, %p93
    %p95 = scmp.ne.s32.totalorder %s87, %s90
    %p96 = scmp.eq.s32.totalorder %s9, 0
    %p97 = por %p95, %p96
    %p98 = scmp.ne.s32.totalorder %s87, %s90
    %p99 = scmp.eq.s32.totalorder %s14, 2
    %p100 = por %p98, %p99
    %p101 = scmp.ne.s32.totalorder %s90, %s91
    %p102 = scmp.eq.s32.totalorder %s14, 0
    %p103 = por %p101, %p102
    %p104 = scmp.ne.s32.totalorder %s90, %s91
    %p105 = scmp.eq.s32.totalorder %s15, 2
    %p106 = por %p104, %p105
    %p108 = scmp.ne.s32.totalorder %s91, %s107
    %p109 = scmp.eq.s32.totalorder %s15, 0
    %p110 = por %p108, %p109
    %p111 = scmp.le.s32.totalorder 1, %s9
    %p112 = scmp.lt.s32.totalorder %s9, 4
    %p113 = pnand %p111, %p112
    %p114 = pneg %p113
    // Predicated region
    $region9: #{cbl_forward_nhwc.3} parent=5 // pred_check
      _
    $region10: #{cbl_forward_nhwc.3} parent=5 // pred_check_branch
      %116 = sbr.rel (%p113) target = $region12
    $region11: #{cbl_forward_nhwc.3} parent=5 // pred_region
      %s117 = ssub.s32 %s9, 1
      // Predicated region
      $region13: #{cbl_forward_nhwc.3} parent=11 // pred_check
        %p118 = pneg %p56
      $region14: #{cbl_forward_nhwc.3} parent=11 // pred_check_branch
        %120 = sbr.rel (%p118) target = $region16
      $region15: #{cbl_forward_nhwc.3} parent=11 // pred_region
        _
      $region16: #{cbl_forward_nhwc.3} parent=11 // pred_fallthru
        _
      // Predicated region
      $region17: #{cbl_forward_nhwc.3} parent=11 // pred_check
        %p121 = pneg %p77
      $region18: #{cbl_forward_nhwc.3} parent=11 // pred_check_branch
        %123 = sbr.rel (%p121) target = $region20
      $region19: #{cbl_forward_nhwc.3} parent=11 // pred_region
        _
      $region20: #{cbl_forward_nhwc.3} parent=11 // pred_fallthru
        _
    $region12: #{cbl_forward_nhwc.3} parent=5 // pred_fallthru
      _
    %p124 = scmp.lt.s32.totalorder %s9, 3
    // Predicated region
    $region21: #{cbl_forward_nhwc.3} parent=5 // pred_check
      %p125 = pneg %p124
    $region22: #{cbl_forward_nhwc.3} parent=5 // pred_check_branch
      %127 = sbr.rel (%p125) target = $region24
    $region23: #{cbl_forward_nhwc.3} parent=5 // pred_region
      // Predicated region
      $region25: #{cbl_forward_nhwc.3} parent=23 // pred_check
        %p128 = pneg %p29
      $region26: #{cbl_forward_nhwc.3} parent=23 // pred_check_branch
        %130 = sbr.rel (%p128) target = $region28
      $region27: #{cbl_forward_nhwc.3} parent=23 // pred_region
        %s131 = smul.u32 32, %s9
        %p132 = scmp.lt.s32.totalorder %s131, 95
        %s133 = scalar_select %p132, %s131, 95
        %s134 = smul.addr %s133, 8
        %s135 = scalar_lea.vmem %s0, %s134
        %s136 = smul.u32 32, %s9
      $region28: #{cbl_forward_nhwc.3} parent=23 // pred_fallthru
        _
    $region24: #{cbl_forward_nhwc.3} parent=5 // pred_fallthru
      _
    %p137 = scmp.le.s32.totalorder 1, %s9
    %p138 = scmp.lt.s32.totalorder %s9, 4
    %p139 = pnand %p137, %p138
    %p140 = pneg %p139
    // Predicated region
    $region29: #{cbl_forward_nhwc.3} parent=5 // pred_check
      _
    $region30: #{cbl_forward_nhwc.3} parent=5 // pred_check_branch
      %142 = sbr.rel (%p139) target = $region32
    $region31: #{cbl_forward_nhwc.3} parent=5 // pred_region
      %s143 = ssub.s32 %s9, 1
      %s144 = smul.u32 32, %s14
      %p145 = scmp.lt.s32.totalorder %s144, 95
      %s146 = scalar_select %p145, %s144, 95
      %s147 = smul.addr %s146, 8
      %s148 = scalar_lea.vmem %s0, %s147
      %p149 = pneg %p35
      %p150 = pneg %p32
      %p151 = pneg %p56
      %p152 = pneg %p53
      %p153 = pneg %p77
      %p154 = pneg %p74
      %p155 = pneg %p103
      %p156 = pneg %p100
      %s157 = smul.u32 32, %s14
      %p158 = scmp.lt.s32.totalorder %s157, 95
      %s159 = scalar_select %p158, %s157, 95
      %s160 = smul.addr %s159, 8
      %s161 = scalar_lea.vmem %s3, %s160
      %s162 = smul.u32 32, %s14
      %p163 = scmp.lt.s32.totalorder %s162, 95
      %s164 = scalar_select %p163, %s162, 95
      %s165 = smul.addr %s164, 8
      %s166 = scalar_lea.vmem %s0, %s165
      %s167 = smul.u32 32, %s14
      %s168 = smul.u32 32, %s14
      %p169 = scmp.lt.s32.totalorder %s168, 95
      %s170 = scalar_select %p169, %s168, 95
      %s171 = smul.addr %s170, 8
      %s172 = scalar_lea.vmem %s3, %s171
      %s173 = smul.u32 32, %s14
      %v174 = vld [vmem:[%s166] sm:$0xff]
      %v175 = vld [vmem:[%s166 + $0x8] sm:$0xff]
      %v176 = vld [vmem:[%s166 + $0x10] sm:$0xff]
      %v177 = vld [vmem:[%s166 + $0x18] sm:$0xff]
      %v178 = vld [vmem:[%s166 + $0x20] sm:$0xff]
      %v179 = vld [vmem:[%s166 + $0x28] sm:$0xff]
      %v180 = vld [vmem:[%s166 + $0x30] sm:$0xff]
      %v181 = vld [vmem:[%s166 + $0x38] sm:$0xff]
      %v182 = vld [vmem:[%s166 + $0x40] sm:$0xff]
      %v183 = vld [vmem:[%s166 + $0x48] sm:$0xff]
      %v184 = vld [vmem:[%s166 + $0x50] sm:$0xff]
      %v185 = vld [vmem:[%s166 + $0x58] sm:$0xff]
      %v186 = vld [vmem:[%s166 + $0x60] sm:$0xff]
      %v187 = vld [vmem:[%s166 + $0x68] sm:$0xff]
      %v188 = vld [vmem:[%s166 + $0x70] sm:$0xff]
      %v189 = vld [vmem:[%s166 + $0x78] sm:$0xff]
      %v190 = vld [vmem:[%s166 + $0x80] sm:$0xff]
      %v191 = vld [vmem:[%s166 + $0x88] sm:$0xff]
      %v192 = vld [vmem:[%s166 + $0x90] sm:$0xff]
      %v193 = vld [vmem:[%s166 + $0x98] sm:$0xff]
      %v194 = vld [vmem:[%s166 + $0xa0] sm:$0xff]
      %v195 = vld [vmem:[%s166 + $0xa8] sm:$0xff]
      %v196 = vld [vmem:[%s166 + $0xb0] sm:$0xff]
      %v197 = vld [vmem:[%s166 + $0xb8] sm:$0xff]
      %v198 = vld [vmem:[%s166 + $0xc0] sm:$0xff]
      %v199 = vld [vmem:[%s166 + $0xc8] sm:$0xff]
      %v200 = vld [vmem:[%s166 + $0xd0] sm:$0xff]
      %v201 = vld [vmem:[%s166 + $0xd8] sm:$0xff]
      %v202 = vld [vmem:[%s166 + $0xe0] sm:$0xff]
      %v203 = vld [vmem:[%s166 + $0xe8] sm:$0xff]
      %v204 = vld [vmem:[%s166 + $0xf0] sm:$0xff]
      %v205 = vld [vmem:[%s166 + $0xf8] sm:$0xff]
      %v206 = vld [vmem:[%s1] sm:$0x1]
      %v208 = vperm.slane %v206, 0
      %v210 = vmul.f32 %v174, %v208
      %v211 = vmul.f32 %v175, %v208
      %v212 = vmul.f32 %v176, %v208
      %v213 = vmul.f32 %v177, %v208
      %v214 = vmul.f32 %v178, %v208
      %v215 = vmul.f32 %v179, %v208
      %v216 = vmul.f32 %v180, %v208
      %v217 = vmul.f32 %v181, %v208
      %v218 = vmul.f32 %v182, %v208
      %v219 = vmul.f32 %v183, %v208
      %v220 = vmul.f32 %v184, %v208
      %v221 = vmul.f32 %v185, %v208
      %v222 = vmul.f32 %v186, %v208
      %v223 = vmul.f32 %v187, %v208
      %v224 = vmul.f32 %v188, %v208
      %v225 = vmul.f32 %v189, %v208
      %v226 = vmul.f32 %v190, %v208
      %v227 = vmul.f32 %v191, %v208
      %v228 = vmul.f32 %v192, %v208
      %v229 = vmul.f32 %v193, %v208
      %v230 = vmul.f32 %v194, %v208
      %v231 = vmul.f32 %v195, %v208
      %v232 = vmul.f32 %v196, %v208
      %v233 = vmul.f32 %v197, %v208
      %v234 = vmul.f32 %v198, %v208
      %v235 = vmul.f32 %v199, %v208
      %v236 = vmul.f32 %v200, %v208
      %v237 = vmul.f32 %v201, %v208
      %v238 = vmul.f32 %v202, %v208
      %v239 = vmul.f32 %v203, %v208
      %v240 = vmul.f32 %v204, %v208
      %v241 = vmul.f32 %v205, %v208
      %v242 = vld [vmem:[%s2] sm:$0x1]
      %v244 = vperm.slane %v242, 0
      %v246 = vadd.f32 %v210, %v244
      %v247 = vadd.f32 %v211, %v244
      %v248 = vadd.f32 %v212, %v244
      %v249 = vadd.f32 %v213, %v244
      %v250 = vadd.f32 %v214, %v244
      %v251 = vadd.f32 %v215, %v244
      %v252 = vadd.f32 %v216, %v244
      %v253 = vadd.f32 %v217, %v244
      %v254 = vadd.f32 %v218, %v244
      %v255 = vadd.f32 %v219, %v244
      %v256 = vadd.f32 %v220, %v244
      %v257 = vadd.f32 %v221, %v244
      %v258 = vadd.f32 %v222, %v244
      %v259 = vadd.f32 %v223, %v244
      %v260 = vadd.f32 %v224, %v244
      %v261 = vadd.f32 %v225, %v244
      %v262 = vadd.f32 %v226, %v244
      %v263 = vadd.f32 %v227, %v244
      %v264 = vadd.f32 %v228, %v244
      %v265 = vadd.f32 %v229, %v244
      %v266 = vadd.f32 %v230, %v244
      %v267 = vadd.f32 %v231, %v244
      %v268 = vadd.f32 %v232, %v244
      %v269 = vadd.f32 %v233, %v244
      %v270 = vadd.f32 %v234, %v244
      %v271 = vadd.f32 %v235, %v244
      %v272 = vadd.f32 %v236, %v244
      %v273 = vadd.f32 %v237, %v244
      %v274 = vadd.f32 %v238, %v244
      %v275 = vadd.f32 %v239, %v244
      %v276 = vadd.f32 %v240, %v244
      %v277 = vadd.f32 %v241, %v244
      %vm278 = vcmp.ge.f32.partialorder %v246, 0.0
      %vm279 = vcmp.ge.f32.partialorder %v247, 0.0
      %vm280 = vcmp.ge.f32.partialorder %v248, 0.0
      %vm281 = vcmp.ge.f32.partialorder %v249, 0.0
      %vm282 = vcmp.ge.f32.partialorder %v250, 0.0
      %vm283 = vcmp.ge.f32.partialorder %v251, 0.0
      %vm284 = vcmp.ge.f32.partialorder %v252, 0.0
      %vm285 = vcmp.ge.f32.partialorder %v253, 0.0
      %vm286 = vcmp.ge.f32.partialorder %v254, 0.0
      %vm287 = vcmp.ge.f32.partialorder %v255, 0.0
      %vm288 = vcmp.ge.f32.partialorder %v256, 0.0
      %vm289 = vcmp.ge.f32.partialorder %v257, 0.0
      %vm290 = vcmp.ge.f32.partialorder %v258, 0.0
      %vm291 = vcmp.ge.f32.partialorder %v259, 0.0
      %vm292 = vcmp.ge.f32.partialorder %v260, 0.0
      %vm293 = vcmp.ge.f32.partialorder %v261, 0.0
      %vm294 = vcmp.ge.f32.partialorder %v262, 0.0
      %vm295 = vcmp.ge.f32.partialorder %v263, 0.0
      %vm296 = vcmp.ge.f32.partialorder %v264, 0.0
      %vm297 = vcmp.ge.f32.partialorder %v265, 0.0
      %vm298 = vcmp.ge.f32.partialorder %v266, 0.0
      %vm299 = vcmp.ge.f32.partialorder %v267, 0.0
      %vm300 = vcmp.ge.f32.partialorder %v268, 0.0
      %vm301 = vcmp.ge.f32.partialorder %v269, 0.0
      %vm302 = vcmp.ge.f32.partialorder %v270, 0.0
      %vm303 = vcmp.ge.f32.partialorder %v271, 0.0
      %vm304 = vcmp.ge.f32.partialorder %v272, 0.0
      %vm305 = vcmp.ge.f32.partialorder %v273, 0.0
      %vm306 = vcmp.ge.f32.partialorder %v274, 0.0
      %vm307 = vcmp.ge.f32.partialorder %v275, 0.0
      %vm308 = vcmp.ge.f32.partialorder %v276, 0.0
      %vm309 = vcmp.ge.f32.partialorder %v277, 0.0
      %v310 = vmul.f32 %v246, 0.1
      %v311 = vmul.f32 %v247, 0.1
      %v312 = vmul.f32 %v248, 0.1
      %v313 = vmul.f32 %v249, 0.1
      %v314 = vmul.f32 %v250, 0.1
      %v315 = vmul.f32 %v251, 0.1
      %v316 = vmul.f32 %v252, 0.1
      %v317 = vmul.f32 %v253, 0.1
      %v318 = vmul.f32 %v254, 0.1
      %v319 = vmul.f32 %v255, 0.1
      %v320 = vmul.f32 %v256, 0.1
      %v321 = vmul.f32 %v257, 0.1
      %v322 = vmul.f32 %v258, 0.1
      %v323 = vmul.f32 %v259, 0.1
      %v324 = vmul.f32 %v260, 0.1
      %v325 = vmul.f32 %v261, 0.1
      %v326 = vmul.f32 %v262, 0.1
      %v327 = vmul.f32 %v263, 0.1
      %v328 = vmul.f32 %v264, 0.1
      %v329 = vmul.f32 %v265, 0.1
      %v330 = vmul.f32 %v266, 0.1
      %v331 = vmul.f32 %v267, 0.1
      %v332 = vmul.f32 %v268, 0.1
      %v333 = vmul.f32 %v269, 0.1
      %v334 = vmul.f32 %v270, 0.1
      %v335 = vmul.f32 %v271, 0.1
      %v336 = vmul.f32 %v272, 0.1
      %v337 = vmul.f32 %v273, 0.1
      %v338 = vmul.f32 %v274, 0.1
      %v339 = vmul.f32 %v275, 0.1
      %v340 = vmul.f32 %v276, 0.1
      %v341 = vmul.f32 %v277, 0.1
      %v342 = vsel %vm278, %v246, %v310
      %v343 = vsel %vm279, %v247, %v311
      %v344 = vsel %vm280, %v248, %v312
      %v345 = vsel %vm281, %v249, %v313
      %v346 = vsel %vm282, %v250, %v314
      %v347 = vsel %vm283, %v251, %v315
      %v348 = vsel %vm284, %v252, %v316
      %v349 = vsel %vm285, %v253, %v317
      %v350 = vsel %vm286, %v254, %v318
      %v351 = vsel %vm287, %v255, %v319
      %v352 = vsel %vm288, %v256, %v320
      %v353 = vsel %vm289, %v257, %v321
      %v354 = vsel %vm290, %v258, %v322
      %v355 = vsel %vm291, %v259, %v323
      %v356 = vsel %vm292, %v260, %v324
      %v357 = vsel %vm293, %v261, %v325
      %v358 = vsel %vm294, %v262, %v326
      %v359 = vsel %vm295, %v263, %v327
      %v360 = vsel %vm296, %v264, %v328
      %v361 = vsel %vm297, %v265, %v329
      %v362 = vsel %vm298, %v266, %v330
      %v363 = vsel %vm299, %v267, %v331
      %v364 = vsel %vm300, %v268, %v332
      %v365 = vsel %vm301, %v269, %v333
      %v366 = vsel %vm302, %v270, %v334
      %v367 = vsel %vm303, %v271, %v335
      %v368 = vsel %vm304, %v272, %v336
      %v369 = vsel %vm305, %v273, %v337
      %v370 = vsel %vm306, %v274, %v338
      %v371 = vsel %vm307, %v275, %v339
      %v372 = vsel %vm308, %v276, %v340
      %v373 = vsel %vm309, %v277, %v341
      %374 = vst [vmem:[%s172] sm:$0xff] %v342
      %375 = vst [vmem:[%s172 + $0x8] sm:$0xff] %v343
      %376 = vst [vmem:[%s172 + $0x10] sm:$0xff] %v344
      %377 = vst [vmem:[%s172 + $0x18] sm:$0xff] %v345
      %378 = vst [vmem:[%s172 + $0x20] sm:$0xff] %v346
      %379 = vst [vmem:[%s172 + $0x28] sm:$0xff] %v347
      %380 = vst [vmem:[%s172 + $0x30] sm:$0xff] %v348
      %381 = vst [vmem:[%s172 + $0x38] sm:$0xff] %v349
      %382 = vst [vmem:[%s172 + $0x40] sm:$0xff] %v350
      %383 = vst [vmem:[%s172 + $0x48] sm:$0xff] %v351
      %384 = vst [vmem:[%s172 + $0x50] sm:$0xff] %v352
      %385 = vst [vmem:[%s172 + $0x58] sm:$0xff] %v353
      %386 = vst [vmem:[%s172 + $0x60] sm:$0xff] %v354
      %387 = vst [vmem:[%s172 + $0x68] sm:$0xff] %v355
      %388 = vst [vmem:[%s172 + $0x70] sm:$0xff] %v356
      %389 = vst [vmem:[%s172 + $0x78] sm:$0xff] %v357
      %390 = vst [vmem:[%s172 + $0x80] sm:$0xff] %v358
      %391 = vst [vmem:[%s172 + $0x88] sm:$0xff] %v359
      %392 = vst [vmem:[%s172 + $0x90] sm:$0xff] %v360
      %393 = vst [vmem:[%s172 + $0x98] sm:$0xff] %v361
      %394 = vst [vmem:[%s172 + $0xa0] sm:$0xff] %v362
      %395 = vst [vmem:[%s172 + $0xa8] sm:$0xff] %v363
      %396 = vst [vmem:[%s172 + $0xb0] sm:$0xff] %v364
      %397 = vst [vmem:[%s172 + $0xb8] sm:$0xff] %v365
      %398 = vst [vmem:[%s172 + $0xc0] sm:$0xff] %v366
      %399 = vst [vmem:[%s172 + $0xc8] sm:$0xff] %v367
      %400 = vst [vmem:[%s172 + $0xd0] sm:$0xff] %v368
      %401 = vst [vmem:[%s172 + $0xd8] sm:$0xff] %v369
      %402 = vst [vmem:[%s172 + $0xe0] sm:$0xff] %v370
      %403 = vst [vmem:[%s172 + $0xe8] sm:$0xff] %v371
      %404 = vst [vmem:[%s172 + $0xf0] sm:$0xff] %v372
      %405 = vst [vmem:[%s172 + $0xf8] sm:$0xff] %v373
      %s406 = smul.u32 32, %s14
      %p407 = scmp.lt.s32.totalorder %s406, 95
      %s408 = scalar_select %p407, %s406, 95
      %s409 = smul.addr %s408, 8
      %s410 = scalar_lea.vmem %s3, %s409
      // Predicated region
      $region33: #{cbl_forward_nhwc.3} parent=31 // pred_check
        %p411 = pneg %p100
      $region34: #{cbl_forward_nhwc.3} parent=31 // pred_check_branch
        %413 = sbr.rel (%p411) target = $region36
      $region35: #{cbl_forward_nhwc.3} parent=31 // pred_region
        %s414 = smul.u32 32, %s14
      $region36: #{cbl_forward_nhwc.3} parent=31 // pred_fallthru
        _
    $region32: #{cbl_forward_nhwc.3} parent=5 // pred_fallthru
      _
    %p415 = scmp.le.s32.totalorder 2, %s9
    // Predicated region
    $region37: #{cbl_forward_nhwc.3} parent=5 // pred_check
      %p416 = pneg %p415
    $region38: #{cbl_forward_nhwc.3} parent=5 // pred_check_branch
      %418 = sbr.rel (%p416) target = $region40
    $region39: #{cbl_forward_nhwc.3} parent=5 // pred_region
      %s419 = ssub.s32 %s9, 2
      // Predicated region
      $region41: #{cbl_forward_nhwc.3} parent=39 // pred_check
        %p420 = pneg %p106
      $region42: #{cbl_forward_nhwc.3} parent=39 // pred_check_branch
        %422 = sbr.rel (%p420) target = $region44
      $region43: #{cbl_forward_nhwc.3} parent=39 // pred_region
        %s423 = smul.u32 32, %s15
        %p424 = scmp.lt.s32.totalorder %s423, 95
        %s425 = scalar_select %p424, %s423, 95
        %s426 = smul.addr %s425, 8
        %s427 = scalar_lea.vmem %s3, %s426
      $region44: #{cbl_forward_nhwc.3} parent=39 // pred_fallthru
        _
    $region40: #{cbl_forward_nhwc.3} parent=5 // pred_fallthru
      _
  $region6: #{cbl_forward_nhwc.3} parent=0 // loop_footer
    %s13 = sadd.s32 1, %s9
  $region7: #{cbl_forward_nhwc.3} parent=0 // loop_footer_branch
    %8 = sbr.rel target = $region3
  $region8: #{cbl_forward_nhwc.3} parent=0 // loop_exit
    _

// kernel: cbl_forward_nhwc.2
$region0: #{cbl_forward_nhwc.2}
  #allocation0 [shape = 'u32[]', space=smem, size = 0x4, offset = 0x4, fixed_abs, tag = 'smem constant byte address 0x4 - core index']
  #allocation1 [shape = 'u32[72,128]{1,0:T(1,128)}', space=vmem, size = 0x9000, scoped, tag = 'internal scratch']
  #allocation2 [shape = 'f32[1,192,4]{2,1,0:T(8,128)}', space=vmem, size = 0x18000, scoped, tag = 'scratch operand']
  #allocation3 [shape = 'f32[1]{0:T(128)}', space=smem, size = 0x200, scoped, tag = 'scratch operand']
  %s0 = inlined_call_operand.vmem [shape: f32[1,896,4], index: 0, kind: input, shape index: {}, may-alias: {0,1}]
  %s1 = inlined_call_operand.vmem [shape: f32[1,896,4], index: 1, kind: input, shape index: {}, may-alias: {0,1}]
  %s2 = inlined_call_operand.vmem [shape: f32[9,4,128], index: 2, kind: input, shape index: {}]
  %s3 = inlined_call_operand.vmem [shape: f32[1,768], index: 3, kind: input, shape index: {}]
  %s4 = inlined_call_operand.vmem [shape: f32[768,128], index: 4, kind: output, shape index: {0}]
  %s5 = inlined_call_operand.vmem [shape: f32[1,128], index: 5, kind: output, shape index: {1}]
  %s6 = inlined_call_operand.vmem [shape: f32[1,128], index: 6, kind: output, shape index: {2}]
  %7 = xla_tuple %s4, %s5, %s6
  %s8 = sld [smem:[#allocation0]]
  $region69: #{cbl_forward_nhwc.2} parent=0
    _
  %s10 = ssub.s32 1, %s8
  %s11 = scalar_select 0, %s10, %s8
  loop: start=0, step=1, limit=8
  $region2: #{cbl_forward_nhwc.2} parent=0 // loop_pre_header
    _
  $region3: #{cbl_forward_nhwc.2} parent=0 // loop_header
    %s13 = sphi 0, %s17
    %p14 = scmp.ge.s32.totalorder %s13, 8
    %s23 = sphi 0, %s25
    %s26 = sphi 0, %s23
    %s27 = sphi 0, %s26
    %s43 = sphi 0, %s27
    %s53 = sphi 0, %s55
    %s56 = sphi 0, %s53
    %s57 = sphi 0, %s56
    %s73 = sphi 0, %s57
    %s77 = sphi 0, %s77
    %s79 = sphi 0, %s77
    %s80 = sphi 0, %s79
    %s94 = sphi 0, %s80
    %s100 = sphi 0, %s102
    %s103 = sphi 0, %s100
    %s104 = sphi 0, %s103
    %s120 = sphi 0, %s104
    %s126 = sphi 0, %s128
    %s129 = sphi 0, %s126
    %s130 = sphi 0, %s129
    %s146 = sphi 0, %s130
    %s150 = sphi 0, %s150
    %s152 = sphi 0, %s150
    %s153 = sphi 0, %s152
    %s167 = sphi 0, %s153
    %s171 = sphi 0, %s171
    %s173 = sphi 0, %s171
    %s174 = sphi 0, %s173
    %s188 = sphi 0, %s174
  $region4: #{cbl_forward_nhwc.2} parent=0 // loop_header_branch
    %16 = sbr.rel (%p14) target = $region8
  $region5: #{cbl_forward_nhwc.2} parent=0 // loop_body
    %s18 = ssub.s32 %s13, 1
    %s19 = ssub.s32 %s13, 2
    %s20 = sadd.s32 %s13, 1
    %s21 = ssub.s32 %s13, %s20
    %p22 = scmp.eq.s32.totalorder %s21, 0
    %s24 = sadd.s32 %s23, 1
    %s25 = scalar_select %p22, %s23, %s24
    %p28 = pneg %p22
    %p29 = scmp.eq.s32.totalorder %s13, 5
    %p30 = por %p28, %p29
    %p31 = scmp.ne.s32.totalorder %s23, %s26
    %p32 = scmp.eq.s32.totalorder %s13, 0
    %p33 = por %p31, %p32
    %p34 = scmp.ne.s32.totalorder %s23, %s26
    %p35 = scmp.eq.s32.totalorder %s18, 5
    %p36 = por %p34, %p35
    %p37 = scmp.ne.s32.totalorder %s26, %s27
    %p38 = scmp.eq.s32.totalorder %s18, 0
    %p39 = por %p37, %p38
    %p40 = scmp.ne.s32.totalorder %s26, %s27
    %p41 = scmp.eq.s32.totalorder %s19, 5
    %p42 = por %p40, %p41
    %p44 = scmp.ne.s32.totalorder %s27, %s43
    %p45 = scmp.eq.s32.totalorder %s19, 0
    %p46 = por %p44, %p45
    %s47 = sadd.s32 %s13, 1
    %s48 = smul.u32 %s47, 2
    %s49 = sadd.s32 %s20, 1
    %s50 = smul.u32 %s49, 2
    %s51 = ssub.s32 %s48, %s50
    %p52 = scmp.eq.s32.totalorder %s51, 0
    %s54 = sadd.s32 %s53, 1
    %s55 = scalar_select %p52, %s53, %s54
    %p58 = pneg %p52
    %p59 = scmp.eq.s32.totalorder %s13, 5
    %p60 = por %p58, %p59
    %p61 = scmp.ne.s32.totalorder %s53, %s56
    %p62 = scmp.eq.s32.totalorder %s13, 0
    %p63 = por %p61, %p62
    %p64 = scmp.ne.s32.totalorder %s53, %s56
    %p65 = scmp.eq.s32.totalorder %s18, 5
    %p66 = por %p64, %p65
    %p67 = scmp.ne.s32.totalorder %s56, %s57
    %p68 = scmp.eq.s32.totalorder %s18, 0
    %p69 = por %p67, %p68
    %p70 = scmp.ne.s32.totalorder %s56, %s57
    %p71 = scmp.eq.s32.totalorder %s19, 5
    %p72 = por %p70, %p71
    %p74 = scmp.ne.s32.totalorder %s57, %s73
    %p75 = scmp.eq.s32.totalorder %s19, 0
    %p76 = por %p74, %p75
    %s78 = sadd.s32 %s77, 1
    %p81 = scmp.eq.s32.totalorder %s13, 5
    %p82 = scmp.ne.s32.totalorder %s77, %s79
    %p83 = scmp.eq.s32.totalorder %s13, 0
    %p84 = por %p82, %p83
    %p85 = scmp.ne.s32.totalorder %s77, %s79
    %p86 = scmp.eq.s32.totalorder %s18, 5
    %p87 = por %p85, %p86
    %p88 = scmp.ne.s32.totalorder %s79, %s80
    %p89 = scmp.eq.s32.totalorder %s18, 0
    %p90 = por %p88, %p89
    %p91 = scmp.ne.s32.totalorder %s79, %s80
    %p92 = scmp.eq.s32.totalorder %s19, 5
    %p93 = por %p91, %p92
    %p95 = scmp.ne.s32.totalorder %s80, %s94
    %p96 = scmp.eq.s32.totalorder %s19, 0
    %p97 = por %p95, %p96
    %s98 = ssub.s32 %s13, %s20
    %p99 = scmp.eq.s32.totalorder %s98, 0
    %s101 = sadd.s32 %s100, 1
    %s102 = scalar_select %p99, %s100, %s101
    %p105 = pneg %p99
    %p106 = scmp.eq.s32.totalorder %s13, 5
    %p107 = por %p105, %p106
    %p108 = scmp.ne.s32.totalorder %s100, %s103
    %p109 = scmp.eq.s32.totalorder %s13, 0
    %p110 = por %p108, %p109
    %p111 = scmp.ne.s32.totalorder %s100, %s103
    %p112 = scmp.eq.s32.totalorder %s18, 5
    %p113 = por %p111, %p112
    %p114 = scmp.ne.s32.totalorder %s103, %s104
    %p115 = scmp.eq.s32.totalorder %s18, 0
    %p116 = por %p114, %p115
    %p117 = scmp.ne.s32.totalorder %s103, %s104
    %p118 = scmp.eq.s32.totalorder %s19, 5
    %p119 = por %p117, %p118
    %p121 = scmp.ne.s32.totalorder %s104, %s120
    %p122 = scmp.eq.s32.totalorder %s19, 0
    %p123 = por %p121, %p122
    %s124 = ssub.s32 %s13, %s20
    %p125 = scmp.eq.s32.totalorder %s124, 0
    %s127 = sadd.s32 %s126, 1
    %s128 = scalar_select %p125, %s126, %s127
    %p131 = pneg %p125
    %p132 = scmp.eq.s32.totalorder %s13, 5
    %p133 = por %p131, %p132
    %p134 = scmp.ne.s32.totalorder %s126, %s129
    %p135 = scmp.eq.s32.totalorder %s13, 0
    %p136 = por %p134, %p135
    %p137 = scmp.ne.s32.totalorder %s126, %s129
    %p138 = scmp.eq.s32.totalorder %s18, 5
    %p139 = por %p137, %p138
    %p140 = scmp.ne.s32.totalorder %s129, %s130
    %p141 = scmp.eq.s32.totalorder %s18, 0
    %p142 = por %p140, %p141
    %p143 = scmp.ne.s32.totalorder %s129, %s130
    %p144 = scmp.eq.s32.totalorder %s19, 5
    %p145 = por %p143, %p144
    %p147 = scmp.ne.s32.totalorder %s130, %s146
    %p148 = scmp.eq.s32.totalorder %s19, 0
    %p149 = por %p147, %p148
    %s151 = sadd.s32 %s150, 1
    %p154 = scmp.eq.s32.totalorder %s13, 5
    %p155 = scmp.ne.s32.totalorder %s150, %s152
    %p156 = scmp.eq.s32.totalorder %s13, 0
    %p157 = por %p155, %p156
    %p158 = scmp.ne.s32.totalorder %s150, %s152
    %p159 = scmp.eq.s32.totalorder %s18, 5
    %p160 = por %p158, %p159
    %p161 = scmp.ne.s32.totalorder %s152, %s153
    %p162 = scmp.eq.s32.totalorder %s18, 0
    %p163 = por %p161, %p162
    %p164 = scmp.ne.s32.totalorder %s152, %s153
    %p165 = scmp.eq.s32.totalorder %s19, 5
    %p166 = por %p164, %p165
    %p168 = scmp.ne.s32.totalorder %s153, %s167
    %p169 = scmp.eq.s32.totalorder %s19, 0
    %p170 = por %p168, %p169
    %s172 = sadd.s32 %s171, 1
    %p175 = scmp.eq.s32.totalorder %s13, 5
    %p176 = scmp.ne.s32.totalorder %s171, %s173
    %p177 = scmp.eq.s32.totalorder %s13, 0
    %p178 = por %p176, %p177
    %p179 = scmp.ne.s32.totalorder %s171, %s173
    %p180 = scmp.eq.s32.totalorder %s18, 5
    %p181 = por %p179, %p180
    %p182 = scmp.ne.s32.totalorder %s173, %s174
    %p183 = scmp.eq.s32.totalorder %s18, 0
    %p184 = por %p182, %p183
    %p185 = scmp.ne.s32.totalorder %s173, %s174
    %p186 = scmp.eq.s32.totalorder %s19, 5
    %p187 = por %p185, %p186
    %p189 = scmp.ne.s32.totalorder %s174, %s188
    %p190 = scmp.eq.s32.totalorder %s19, 0
    %p191 = por %p189, %p190
    %p192 = scmp.le.s32.totalorder 1, %s13
    %p193 = scmp.lt.s32.totalorder %s13, 7
    %p194 = pnand %p192, %p193
    %p195 = pneg %p194
    // Predicated region
    $region9: #{cbl_forward_nhwc.2} parent=5 // pred_check
      _
    $region10: #{cbl_forward_nhwc.2} parent=5 // pred_check_branch
      %197 = sbr.rel (%p194) target = $region12
    $region11: #{cbl_forward_nhwc.2} parent=5 // pred_region
      %s198 = ssub.s32 %s13, 1
      // Predicated region
      $region13: #{cbl_forward_nhwc.2} parent=11 // pred_check
        %p199 = pneg %p90
      $region14: #{cbl_forward_nhwc.2} parent=11 // pred_check_branch
        %201 = sbr.rel (%p199) target = $region16
      $region15: #{cbl_forward_nhwc.2} parent=11 // pred_region
        _
      $region16: #{cbl_forward_nhwc.2} parent=11 // pred_fallthru
        _
    $region12: #{cbl_forward_nhwc.2} parent=5 // pred_fallthru
      _
    %p202 = scmp.lt.s32.totalorder %s13, 6
    // Predicated region
    $region17: #{cbl_forward_nhwc.2} parent=5 // pred_check
      %p203 = pneg %p202
    $region18: #{cbl_forward_nhwc.2} parent=5 // pred_check_branch
      %205 = sbr.rel (%p203) target = $region20
    $region19: #{cbl_forward_nhwc.2} parent=5 // pred_region
      // Predicated region
      $region21: #{cbl_forward_nhwc.2} parent=19 // pred_check
        %p206 = pneg %p33
      $region22: #{cbl_forward_nhwc.2} parent=19 // pred_check_branch
        %208 = sbr.rel (%p206) target = $region24
      $region23: #{cbl_forward_nhwc.2} parent=19 // pred_region
        %s209 = smul.u32 16, %s13
        %p210 = scmp.lt.s32.totalorder %s209, 111
        %s211 = scalar_select %p210, %s209, 111
        %s212 = smul.addr %s211, 8
        %s213 = scalar_lea.vmem %s0, %s212
        %s214 = smul.u32 16, %s13
      $region24: #{cbl_forward_nhwc.2} parent=19 // pred_fallthru
        _
      // Predicated region
      $region25: #{cbl_forward_nhwc.2} parent=19 // pred_check
        %p215 = pneg %p63
      $region26: #{cbl_forward_nhwc.2} parent=19 // pred_check_branch
        %217 = sbr.rel (%p215) target = $region28
      $region27: #{cbl_forward_nhwc.2} parent=19 // pred_region
        %s218 = sadd.s32 %s13, 1
        %s219 = smul.u32 %s218, 2
        %s220 = smul.u32 8, %s219
        %p221 = scmp.lt.s32.totalorder %s220, 111
        %s222 = scalar_select %p221, %s220, 111
        %s223 = smul.addr %s222, 8
        %s224 = scalar_lea.vmem %s1, %s223
        %s225 = sadd.s32 %s13, 1
        %s226 = smul.u32 %s225, 2
        %s227 = smul.u32 8, %s226
      $region28: #{cbl_forward_nhwc.2} parent=19 // pred_fallthru
        _
      // Predicated region
      $region29: #{cbl_forward_nhwc.2} parent=19 // pred_check
        %p228 = pneg %p110
      $region30: #{cbl_forward_nhwc.2} parent=19 // pred_check_branch
        %230 = sbr.rel (%p228) target = $region32
      $region31: #{cbl_forward_nhwc.2} parent=19 // pred_region
        %p231 = scmp.lt.s32.totalorder %s13, 5
        %s232 = scalar_select %p231, %s13, 5
        %s233 = scalar_lea.vmem %s3, %s232
      $region32: #{cbl_forward_nhwc.2} parent=19 // pred_fallthru
        _
    $region20: #{cbl_forward_nhwc.2} parent=5 // pred_fallthru
      _
    %p234 = scmp.le.s32.totalorder 1, %s13
    %p235 = scmp.lt.s32.totalorder %s13, 7
    %p236 = pnand %p234, %p235
    %p237 = pneg %p236
    // Predicated region
    $region33: #{cbl_forward_nhwc.2} parent=5 // pred_check
      _
    $region34: #{cbl_forward_nhwc.2} parent=5 // pred_check_branch
      %239 = sbr.rel (%p236) target = $region36
    $region35: #{cbl_forward_nhwc.2} parent=5 // pred_region
      %s240 = ssub.s32 %s13, 1
      %s241 = smul.u32 16, %s18
      %p242 = scmp.lt.s32.totalorder %s241, 111
      %s243 = scalar_select %p242, %s241, 111
      %s244 = smul.addr %s243, 8
      %s245 = scalar_lea.vmem %s0, %s244
      %p246 = pneg %p39
      %p247 = pneg %p36
      %s248 = sadd.s32 %s18, 1
      %s249 = smul.u32 %s248, 2
      %s250 = smul.u32 8, %s249
      %p251 = scmp.lt.s32.totalorder %s250, 111
      %s252 = scalar_select %p251, %s250, 111
      %s253 = smul.addr %s252, 8
      %s254 = scalar_lea.vmem %s1, %s253
      %p255 = pneg %p69
      %p256 = pneg %p66
      %p257 = pneg %p90
      %p258 = pneg %p87
      %p259 = scmp.lt.s32.totalorder %s18, 5
      %s260 = scalar_select %p259, %s18, 5
      %s261 = scalar_lea.vmem %s3, %s260
      %p262 = pneg %p116
      %p263 = pneg %p113
      %p264 = pneg %p142
      %p265 = pneg %p139
      %s266 = smul.u32 16, %s18
      %p267 = scmp.lt.s32.totalorder %s266, 95
      %s268 = scalar_select %p267, %s266, 95
      %s269 = smul.addr %s268, 8
      %s270 = scalar_lea.vmem %s4, %s269
      %p271 = pneg %p163
      %p272 = pneg %p160
      %p273 = pneg %p184
      %p274 = pneg %p181
      %s275 = smul.u32 16, %s18
      %p276 = scmp.lt.s32.totalorder %s275, 111
      %s277 = scalar_select %p276, %s275, 111
      %s278 = smul.addr %s277, 8
      %s279 = scalar_lea.vmem %s0, %s278
      %s280 = smul.u32 16, %s18
      %s281 = sadd.s32 %s18, 1
      %s282 = smul.u32 %s281, 2
      %s283 = smul.u32 8, %s282
      %p284 = scmp.lt.s32.totalorder %s283, 111
      %s285 = scalar_select %p284, %s283, 111
      %s286 = smul.addr %s285, 8
      %s287 = scalar_lea.vmem %s1, %s286
      %s288 = sadd.s32 %s18, 1
      %s289 = smul.u32 %s288, 2
      %s290 = smul.u32 8, %s289
      %p291 = scmp.lt.s32.totalorder %s18, 5
      %s292 = scalar_select %p291, %s18, 5
      %s293 = scalar_lea.vmem %s3, %s292
      %s294 = smul.u32 16, %s18
      %p295 = scmp.lt.s32.totalorder %s294, 95
      %s296 = scalar_select %p295, %s294, 95
      %s297 = smul.addr %s296, 8
      %s298 = scalar_lea.vmem %s4, %s297
      %s299 = smul.u32 16, %s18
      %p300 = scmp.eq.s32.totalorder %s18, 0
      // Predicated region
      $region37: #{cbl_forward_nhwc.2} parent=35 // pred_check
        %p301 = pneg %p300
      $region38: #{cbl_forward_nhwc.2} parent=35 // pred_check_branch
        %303 = sbr.rel (%p301) target = $region40
      $region39: #{cbl_forward_nhwc.2} parent=35 // pred_region
        %304 = vst [vmem:[%s5] sm:$0x1] 0.0
        %305 = vst [vmem:[%s6] sm:$0x1] 0.0
        %s306 = scalar_lea.smem [#allocation3], 0
        %307 = sst [smem:[%s306]] 0.0
      $region40: #{cbl_forward_nhwc.2} parent=35 // pred_fallthru
        _
      %v308 = vld [vmem:[%s279] sm:$0xff]
      %v309 = vld [vmem:[%s279 + $0x8] sm:$0xff]
      %v310 = vld [vmem:[%s279 + $0x10] sm:$0xff]
      %v311 = vld [vmem:[%s279 + $0x18] sm:$0xff]
      %v312 = vld [vmem:[%s279 + $0x20] sm:$0xff]
      %v313 = vld [vmem:[%s279 + $0x28] sm:$0xff]
      %v314 = vld [vmem:[%s279 + $0x30] sm:$0xff]
      %v315 = vld [vmem:[%s279 + $0x38] sm:$0xff]
      %v316 = vld [vmem:[%s279 + $0x40] sm:$0xff]
      %v317 = vld [vmem:[%s279 + $0x48] sm:$0xff]
      %v318 = vld [vmem:[%s279 + $0x50] sm:$0xff]
      %v319 = vld [vmem:[%s279 + $0x58] sm:$0xff]
      %v320 = vld [vmem:[%s279 + $0x60] sm:$0xff]
      %v321 = vld [vmem:[%s279 + $0x68] sm:$0xff]
      %v322 = vld [vmem:[%s279 + $0x70] sm:$0xff]
      %v323 = vld [vmem:[%s279 + $0x78] sm:$0xff]
      %vm324 = vcmask 31744
      %325 = vst.msk [vmem:[#allocation2] sm:$0xff] %vm324, %v308
      %326 = vst.msk [vmem:[#allocation2 + $0x8] sm:$0xff] %vm324, %v309
      %327 = vst.msk [vmem:[#allocation2 + $0x10] sm:$0xff] %vm324, %v310
      %328 = vst.msk [vmem:[#allocation2 + $0x18] sm:$0xff] %vm324, %v311
      %329 = vst.msk [vmem:[#allocation2 + $0x20] sm:$0xff] %vm324, %v312
      %330 = vst.msk [vmem:[#allocation2 + $0x28] sm:$0xff] %vm324, %v313
      %331 = vst.msk [vmem:[#allocation2 + $0x30] sm:$0xff] %vm324, %v314
      %332 = vst.msk [vmem:[#allocation2 + $0x38] sm:$0xff] %vm324, %v315
      %333 = vst.msk [vmem:[#allocation2 + $0x40] sm:$0xff] %vm324, %v316
      %334 = vst.msk [vmem:[#allocation2 + $0x48] sm:$0xff] %vm324, %v317
      %335 = vst.msk [vmem:[#allocation2 + $0x50] sm:$0xff] %vm324, %v318
      %336 = vst.msk [vmem:[#allocation2 + $0x58] sm:$0xff] %vm324, %v319
      %337 = vst.msk [vmem:[#allocation2 + $0x60] sm:$0xff] %vm324, %v320
      %338 = vst.msk [vmem:[#allocation2 + $0x68] sm:$0xff] %vm324, %v321
      %339 = vst.msk [vmem:[#allocation2 + $0x70] sm:$0xff] %vm324, %v322
      %340 = vst.msk [vmem:[#allocation2 + $0x78] sm:$0xff] %vm324, %v323
      %v341 = vld [vmem:[%s287] sm:$0xff]
      %v342 = vld [vmem:[%s287 + $0x8] sm:$0xff]
      %v343 = vld [vmem:[%s287 + $0x10] sm:$0xff]
      %v344 = vld [vmem:[%s287 + $0x18] sm:$0xff]
      %v345 = vld [vmem:[%s287 + $0x20] sm:$0xff]
      %v346 = vld [vmem:[%s287 + $0x28] sm:$0xff]
      %v347 = vld [vmem:[%s287 + $0x30] sm:$0xff]
      %v348 = vld [vmem:[%s287 + $0x38] sm:$0xff]
      %349 = vst.msk [vmem:[#allocation2 + $0x80] sm:$0xff] %vm324, %v341
      %350 = vst.msk [vmem:[#allocation2 + $0x88] sm:$0xff] %vm324, %v342
      %351 = vst.msk [vmem:[#allocation2 + $0x90] sm:$0xff] %vm324, %v343
      %352 = vst.msk [vmem:[#allocation2 + $0x98] sm:$0xff] %vm324, %v344
      %353 = vst.msk [vmem:[#allocation2 + $0xa0] sm:$0xff] %vm324, %v345
      %354 = vst.msk [vmem:[#allocation2 + $0xa8] sm:$0xff] %vm324, %v346
      %355 = vst.msk [vmem:[#allocation2 + $0xb0] sm:$0xff] %vm324, %v347
      %356 = vst.msk [vmem:[#allocation2 + $0xb8] sm:$0xff] %vm324, %v348
      %v357 = vld [vmem:[#allocation2] sm:$0xff]
      %v358 = vld [vmem:[#allocation2 + $0x8] sm:$0xff]
      %v359 = vld [vmem:[#allocation2 + $0x10] sm:$0xff]
      %v360 = vld [vmem:[#allocation2 + $0x18] sm:$0xff]
      %v361 = vld [vmem:[#allocation2 + $0x20] sm:$0xff]
      %v362 = vld [vmem:[#allocation2 + $0x28] sm:$0xff]
      %v363 = vld [vmem:[#allocation2 + $0x30] sm:$0xff]
      %v364 = vld [vmem:[#allocation2 + $0x38] sm:$0xff]
      %v365 = vld [vmem:[#allocation2 + $0x40] sm:$0xff]
      %v366 = vld [vmem:[#allocation2 + $0x48] sm:$0xff]
      %v367 = vld [vmem:[#allocation2 + $0x50] sm:$0xff]
      %v368 = vld [vmem:[#allocation2 + $0x58] sm:$0xff]
      %v369 = vld [vmem:[#allocation2 + $0x60] sm:$0xff]
      %v370 = vld [vmem:[#allocation2 + $0x68] sm:$0xff]
      %v371 = vld [vmem:[#allocation2 + $0x70] sm:$0xff]
      %v372 = vld [vmem:[#allocation2 + $0x78] sm:$0xff]
      %v373 = vld [vmem:[%s2] sm:$0xf]
      %v374 = vld [vmem:[#allocation2 + $0x1] sm:$0xff]
      %v375 = vld [vmem:[#allocation2 + $0x9] sm:$0xff]
      %v376 = vld [vmem:[#allocation2 + $0x11] sm:$0xff]
      %v377 = vld [vmem:[#allocation2 + $0x19] sm:$0xff]
      %v378 = vld [vmem:[#allocation2 + $0x21] sm:$0xff]
      %v379 = vld [vmem:[#allocation2 + $0x29] sm:$0xff]
      %v380 = vld [vmem:[#allocation2 + $0x31] sm:$0xff]
      %v381 = vld [vmem:[#allocation2 + $0x39] sm:$0xff]
      %v382 = vld [vmem:[#allocation2 + $0x41] sm:$0xff]
      %v383 = vld [vmem:[#allocation2 + $0x49] sm:$0xff]
      %v384 = vld [vmem:[#allocation2 + $0x51] sm:$0xff]
      %v385 = vld [vmem:[#allocation2 + $0x59] sm:$0xff]
      %v386 = vld [vmem:[#allocation2 + $0x61] sm:$0xff]
      %v387 = vld [vmem:[#allocation2 + $0x69] sm:$0xff]
      %v388 = vld [vmem:[#allocation2 + $0x71] sm:$0xff]
      %v389 = vld [vmem:[#allocation2 + $0x79] sm:$0xff]
      %s390 = scalar_lea.vmem %s2, 4
      %v391 = vld [vmem:[%s390] sm:$0xf]
      %v393 = vsel %vm324, %v374, 0
      %v396 = vsel %vm324, %v375, 0
      %v399 = vsel %vm324, %v376, 0
      %v402 = vsel %vm324, %v377, 0
      %v405 = vsel %vm324, %v378, 0
      %v408 = vsel %vm324, %v379, 0
      %v411 = vsel %vm324, %v380, 0
      %v414 = vsel %vm324, %v381, 0
      %v417 = vsel %vm324, %v382, 0
      %v420 = vsel %vm324, %v383, 0
      %v423 = vsel %vm324, %v384, 0
      %v426 = vsel %vm324, %v385, 0
      %v429 = vsel %vm324, %v386, 0
      %v432 = vsel %vm324, %v387, 0
      %v435 = vsel %vm324, %v388, 0
      %v438 = vsel %vm324, %v389, 0
      %vm440 = vcmask 1043456
      %v442 = vsel %vm440, %v391, 0
      %444 = vmatpush.msra.mxu0 0.0
      %445 = vmatpush.msra.mxu0 0.0
      %446 = vmatpush.msra.mxu0 0.0
      %447 = vmatpush.msra.mxu0 0.0
      %448 = vmatpush.msra.mxu0 0.0
      %449 = vmatpush.msra.mxu0 0.0
      %450 = vmatpush.msra.mxu0 0.0
      %451 = vmatpush.msra.mxu0 0.0
      %452 = vmatpush.msra.mxu0 0.0
      %453 = vmatpush.msra.mxu0 0.0
      %454 = vmatpush.msra.mxu0 0.0
      %455 = vmatpush.msra.mxu0 0.0
      %456 = vmatpush.msra.mxu0 0.0
      %457 = vmatpush.msra.mxu0 0.0
      %458 = vmatpush.msra.mxu0 0.0
      %459 = vmatpush.msra.mxu0 %v442
      %460 = vmatmul.f32.gmra.mxu0 %v393
      %v461 = vpop.f32.mrf.mxu0
      %v462 = vadd.f32 0.0, %v461
      %463 = vmatmul.f32.gmra.mxu0 %v396
      %v464 = vpop.f32.mrf.mxu0
      %v465 = vadd.f32 0.0, %v464
      %466 = vmatmul.f32.gmra.mxu0 %v399
      %v467 = vpop.f32.mrf.mxu0
      %v468 = vadd.f32 0.0, %v467
      %469 = vmatmul.f32.gmra.mxu0 %v402
      %v470 = vpop.f32.mrf.mxu0
      %v471 = vadd.f32 0.0, %v470
      %472 = vmatmul.f32.gmra.mxu0 %v405
      %v473 = vpop.f32.mrf.mxu0
      %v474 = vadd.f32 0.0, %v473
      %475 = vmatmul.f32.gmra.mxu0 %v408
      %v476 = vpop.f32.mrf.mxu0
      %v477 = vadd.f32 0.0, %v476
      %478 = vmatmul.f32.gmra.mxu0 %v411
      %v479 = vpop.f32.mrf.mxu0
      %v480 = vadd.f32 0.0, %v479
      %481 = vmatmul.f32.gmra.mxu0 %v414
      %v482 = vpop.f32.mrf.mxu0
      %v483 = vadd.f32 0.0, %v482
      %484 = vmatmul.f32.gmra.mxu0 %v417
      %v485 = vpop.f32.mrf.mxu0
      %v486 = vadd.f32 0.0, %v485
      %487 = vmatmul.f32.gmra.mxu0 %v420
      %v488 = vpop.f32.mrf.mxu0
      %v489 = vadd.f32 0.0, %v488
      %490 = vmatmul.f32.gmra.mxu0 %v423
      %v491 = vpop.f32.mrf.mxu0
      %v492 = vadd.f32 0.0, %v491
      %493 = vmatmul.f32.gmra.mxu0 %v426
      %v494 = vpop.f32.mrf.mxu0
      %v495 = vadd.f32 0.0, %v494
      %496 = vmatmul.f32.gmra.mxu0 %v429
      %v497 = vpop.f32.mrf.mxu0
      %v498 = vadd.f32 0.0, %v497
      %499 = vmatmul.f32.gmra.mxu0 %v432
      %v500 = vpop.f32.mrf.mxu0
      %v501 = vadd.f32 0.0, %v500
      %502 = vmatmul.f32.gmra.mxu0 %v435
      %v503 = vpop.f32.mrf.mxu0
      %v504 = vadd.f32 0.0, %v503
      %505 = vmatmul.f32.gmra.mxu0 %v438
      %v506 = vpop.f32.mrf.mxu0
      %v507 = vadd.f32 0.0, %v506
      %508 = vdwg.mxu0
      %v510 = vsel %vm324, %v357, 0
      %v513 = vsel %vm324, %v358, 0
      %v516 = vsel %vm324, %v359, 0
      %v519 = vsel %vm324, %v360, 0
      %v522 = vsel %vm324, %v361, 0
      %v525 = vsel %vm324, %v362, 0
      %v528 = vsel %vm324, %v363, 0
      %v531 = vsel %vm324, %v364, 0
      %v534 = vsel %vm324, %v365, 0
      %v537 = vsel %vm324, %v366, 0
      %v540 = vsel %vm324, %v367, 0
      %v543 = vsel %vm324, %v368, 0
      %v546 = vsel %vm324, %v369, 0
      %v549 = vsel %vm324, %v370, 0
      %v552 = vsel %vm324, %v371, 0
      %v555 = vsel %vm324, %v372, 0
      %v558 = vsel %vm440, %v373, 0
      %560 = vmatpush.msra.mxu0 0.0
      %561 = vmatpush.msra.mxu0 0.0
      %562 = vmatpush.msra.mxu0 0.0
      %563 = vmatpush.msra.mxu0 0.0
      %564 = vmatpush.msra.mxu0 0.0
      %565 = vmatpush.msra.mxu0 0.0
      %566 = vmatpush.msra.mxu0 0.0
      %567 = vmatpush.msra.mxu0 0.0
      %568 = vmatpush.msra.mxu0 0.0
      %569 = vmatpush.msra.mxu0 0.0
      %570 = vmatpush.msra.mxu0 0.0
      %571 = vmatpush.msra.mxu0 0.0
      %572 = vmatpush.msra.mxu0 0.0
      %573 = vmatpush.msra.mxu0 0.0
      %574 = vmatpush.msra.mxu0 0.0
      %575 = vmatpush.msra.mxu0 %v558
      %576 = vmatmul.f32.gmra.mxu0 %v510
      %v577 = vpop.f32.mrf.mxu0
      %v578 = vadd.f32 %v462, %v577
      %579 = vmatmul.f32.gmra.mxu0 %v513
      %v580 = vpop.f32.mrf.mxu0
      %v581 = vadd.f32 %v465, %v580
      %582 = vmatmul.f32.gmra.mxu0 %v516
      %v583 = vpop.f32.mrf.mxu0
      %v584 = vadd.f32 %v468, %v583
      %585 = vmatmul.f32.gmra.mxu0 %v519
      %v586 = vpop.f32.mrf.mxu0
      %v587 = vadd.f32 %v471, %v586
      %588 = vmatmul.f32.gmra.mxu0 %v522
      %v589 = vpop.f32.mrf.mxu0
      %v590 = vadd.f32 %v474, %v589
      %591 = vmatmul.f32.gmra.mxu0 %v525
      %v592 = vpop.f32.mrf.mxu0
      %v593 = vadd.f32 %v477, %v592
      %594 = vmatmul.f32.gmra.mxu0 %v528
      %v595 = vpop.f32.mrf.mxu0
      %v596 = vadd.f32 %v480, %v595
      %597 = vmatmul.f32.gmra.mxu0 %v531
      %v598 = vpop.f32.mrf.mxu0
      %v599 = vadd.f32 %v483, %v598
      %600 = vmatmul.f32.gmra.mxu0 %v534
      %v601 = vpop.f32.mrf.mxu0
      %v602 = vadd.f32 %v486, %v601
      %603 = vmatmul.f32.gmra.mxu0 %v537
      %v604 = vpop.f32.mrf.mxu0
      %v605 = vadd.f32 %v489, %v604
      %606 = vmatmul.f32.gmra.mxu0 %v540
      %v607 = vpop.f32.mrf.mxu0
      %v608 = vadd.f32 %v492, %v607
      %609 = vmatmul.f32.gmra.mxu0 %v543
      %v610 = vpop.f32.mrf.mxu0
      %v611 = vadd.f32 %v495, %v610
      %612 = vmatmul.f32.gmra.mxu0 %v546
      %v613 = vpop.f32.mrf.mxu0
      %v614 = vadd.f32 %v498, %v613
      %615 = vmatmul.f32.gmra.mxu0 %v549
      %v616 = vpop.f32.mrf.mxu0
      %v617 = vadd.f32 %v501, %v616
      %618 = vmatmul.f32.gmra.mxu0 %v552
      %v619 = vpop.f32.mrf.mxu0
      %v620 = vadd.f32 %v504, %v619
      %621 = vmatmul.f32.gmra.mxu0 %v555
      %v622 = vpop.f32.mrf.mxu0
      %v623 = vadd.f32 %v507, %v622
      %624 = vdwg.mxu0
      %v625 = vld [vmem:[#allocation2 + $0x2] sm:$0xff]
      %v626 = vld [vmem:[#allocation2 + $0xa] sm:$0xff]
      %v627 = vld [vmem:[#allocation2 + $0x12] sm:$0xff]
      %v628 = vld [vmem:[#allocation2 + $0x1a] sm:$0xff]
      %v629 = vld [vmem:[#allocation2 + $0x22] sm:$0xff]
      %v630 = vld [vmem:[#allocation2 + $0x2a] sm:$0xff]
      %v631 = vld [vmem:[#allocation2 + $0x32] sm:$0xff]
      %v632 = vld [vmem:[#allocation2 + $0x3a] sm:$0xff]
      %v633 = vld [vmem:[#allocation2 + $0x42] sm:$0xff]
      %v634 = vld [vmem:[#allocation2 + $0x4a] sm:$0xff]
      %v635 = vld [vmem:[#allocation2 + $0x52] sm:$0xff]
      %v636 = vld [vmem:[#allocation2 + $0x5a] sm:$0xff]
      %v637 = vld [vmem:[#allocation2 + $0x62] sm:$0xff]
      %v638 = vld [vmem:[#allocation2 + $0x6a] sm:$0xff]
      %v639 = vld [vmem:[#allocation2 + $0x72] sm:$0xff]
      %v640 = vld [vmem:[#allocation2 + $0x7a] sm:$0xff]
      %s641 = scalar_lea.vmem %s2, 8
      %v642 = vld [vmem:[%s641] sm:$0xf]
      %v644 = vsel %vm324, %v625, 0
      %v647 = vsel %vm324, %v626, 0
      %v650 = vsel %vm324, %v627, 0
      %v653 = vsel %vm324, %v628, 0
      %v656 = vsel %vm324, %v629, 0
      %v659 = vsel %vm324, %v630, 0
      %v662 = vsel %vm324, %v631, 0
      %v665 = vsel %vm324, %v632, 0
      %v668 = vsel %vm324, %v633, 0
      %v671 = vsel %vm324, %v634, 0
      %v674 = vsel %vm324, %v635, 0
      %v677 = vsel %vm324, %v636, 0
      %v680 = vsel %vm324, %v637, 0
      %v683 = vsel %vm324, %v638, 0
      %v686 = vsel %vm324, %v639, 0
      %v689 = vsel %vm324, %v640, 0
      %v692 = vsel %vm440, %v642, 0
      %694 = vmatpush.msra.mxu0 0.0
      %695 = vmatpush.msra.mxu0 0.0
      %696 = vmatpush.msra.mxu0 0.0
      %697 = vmatpush.msra.mxu0 0.0
      %698 = vmatpush.msra.mxu0 0.0
      %699 = vmatpush.msra.mxu0 0.0
      %700 = vmatpush.msra.mxu0 0.0
      %701 = vmatpush.msra.mxu0 0.0
      %702 = vmatpush.msra.mxu0 0.0
      %703 = vmatpush.msra.mxu0 0.0
      %704 = vmatpush.msra.mxu0 0.0
      %705 = vmatpush.msra.mxu0 0.0
      %706 = vmatpush.msra.mxu0 0.0
      %707 = vmatpush.msra.mxu0 0.0
      %708 = vmatpush.msra.mxu0 0.0
      %709 = vmatpush.msra.mxu0 %v692
      %710 = vmatmul.f32.gmra.mxu0 %v644
      %v711 = vpop.f32.mrf.mxu0
      %v712 = vadd.f32 0.0, %v711
      %713 = vmatmul.f32.gmra.mxu0 %v647
      %v714 = vpop.f32.mrf.mxu0
      %v715 = vadd.f32 0.0, %v714
      %716 = vmatmul.f32.gmra.mxu0 %v650
      %v717 = vpop.f32.mrf.mxu0
      %v718 = vadd.f32 0.0, %v717
      %719 = vmatmul.f32.gmra.mxu0 %v653
      %v720 = vpop.f32.mrf.mxu0
      %v721 = vadd.f32 0.0, %v720
      %722 = vmatmul.f32.gmra.mxu0 %v656
      %v723 = vpop.f32.mrf.mxu0
      %v724 = vadd.f32 0.0, %v723
      %725 = vmatmul.f32.gmra.mxu0 %v659
      %v726 = vpop.f32.mrf.mxu0
      %v727 = vadd.f32 0.0, %v726
      %728 = vmatmul.f32.gmra.mxu0 %v662
      %v729 = vpop.f32.mrf.mxu0
      %v730 = vadd.f32 0.0, %v729
      %731 = vmatmul.f32.gmra.mxu0 %v665
      %v732 = vpop.f32.mrf.mxu0
      %v733 = vadd.f32 0.0, %v732
      %734 = vmatmul.f32.gmra.mxu0 %v668
      %v735 = vpop.f32.mrf.mxu0
      %v736 = vadd.f32 0.0, %v735
      %737 = vmatmul.f32.gmra.mxu0 %v671
      %v738 = vpop.f32.mrf.mxu0
      %v739 = vadd.f32 0.0, %v738
      %740 = vmatmul.f32.gmra.mxu0 %v674
      %v741 = vpop.f32.mrf.mxu0
      %v742 = vadd.f32 0.0, %v741
      %743 = vmatmul.f32.gmra.mxu0 %v677
      %v744 = vpop.f32.mrf.mxu0
      %v745 = vadd.f32 0.0, %v744
      %746 = vmatmul.f32.gmra.mxu0 %v680
      %v747 = vpop.f32.mrf.mxu0
      %v748 = vadd.f32 0.0, %v747
      %749 = vmatmul.f32.gmra.mxu0 %v683
      %v750 = vpop.f32.mrf.mxu0
      %v751 = vadd.f32 0.0, %v750
      %752 = vmatmul.f32.gmra.mxu0 %v686
      %v753 = vpop.f32.mrf.mxu0
      %v754 = vadd.f32 0.0, %v753
      %755 = vmatmul.f32.gmra.mxu0 %v689
      %v756 = vpop.f32.mrf.mxu0
      %v757 = vadd.f32 0.0, %v756
      %758 = vdwg.mxu0
      %v759 = vadd.f32 %v578, %v712
      %v760 = vadd.f32 %v581, %v715
      %v761 = vadd.f32 %v584, %v718
      %v762 = vadd.f32 %v587, %v721
      %v763 = vadd.f32 %v590, %v724
      %v764 = vadd.f32 %v593, %v727
      %v765 = vadd.f32 %v596, %v730
      %v766 = vadd.f32 %v599, %v733
      %v767 = vadd.f32 %v602, %v736
      %v768 = vadd.f32 %v605, %v739
      %v769 = vadd.f32 %v608, %v742
      %v770 = vadd.f32 %v611, %v745
      %v771 = vadd.f32 %v614, %v748
      %v772 = vadd.f32 %v617, %v751
      %v773 = vadd.f32 %v620, %v754
      %v774 = vadd.f32 %v623, %v757
      %v775 = vld [vmem:[#allocation2 + $0x12] sm:$0xff]
      %v776 = vld [vmem:[#allocation2 + $0x1a] sm:$0xff]
      %v777 = vld [vmem:[#allocation2 + $0x22] sm:$0xff]
      %v778 = vld [vmem:[#allocation2 + $0x2a] sm:$0xff]
      %v779 = vld [vmem:[#allocation2 + $0x32] sm:$0xff]
      %v780 = vld [vmem:[#allocation2 + $0x3a] sm:$0xff]
      %v781 = vld [vmem:[#allocation2 + $0x42] sm:$0xff]
      %v782 = vld [vmem:[#allocation2 + $0x4a] sm:$0xff]
      %v783 = vld [vmem:[#allocation2 + $0x52] sm:$0xff]
      %v784 = vld [vmem:[#allocation2 + $0x5a] sm:$0xff]
      %v785 = vld [vmem:[#allocation2 + $0x62] sm:$0xff]
      %v786 = vld [vmem:[#allocation2 + $0x6a] sm:$0xff]
      %v787 = vld [vmem:[#allocation2 + $0x72] sm:$0xff]
      %v788 = vld [vmem:[#allocation2 + $0x7a] sm:$0xff]
      %v789 = vld [vmem:[#allocation2 + $0x82] sm:$0xff]
      %v790 = vld [vmem:[#allocation2 + $0x8a] sm:$0xff]
      %s791 = scalar_lea.vmem %s2, 12
      %v792 = vld [vmem:[%s791] sm:$0xf]
      %v794 = vsel %vm324, %v775, 0
      %v797 = vsel %vm324, %v776, 0
      %v800 = vsel %vm324, %v777, 0
      %v803 = vsel %vm324, %v778, 0
      %v806 = vsel %vm324, %v779, 0
      %v809 = vsel %vm324, %v780, 0
      %v812 = vsel %vm324, %v781, 0
      %v815 = vsel %vm324, %v782, 0
      %v818 = vsel %vm324, %v783, 0
      %v821 = vsel %vm324, %v784, 0
      %v824 = vsel %vm324, %v785, 0
      %v827 = vsel %vm324, %v786, 0
      %v830 = vsel %vm324, %v787, 0
      %v833 = vsel %vm324, %v788, 0
      %v836 = vsel %vm324, %v789, 0
      %v839 = vsel %vm324, %v790, 0
      %v842 = vsel %vm440, %v792, 0
      %844 = vmatpush.msra.mxu0 0.0
      %845 = vmatpush.msra.mxu0 0.0
      %846 = vmatpush.msra.mxu0 0.0
      %847 = vmatpush.msra.mxu0 0.0
      %848 = vmatpush.msra.mxu0 0.0
      %849 = vmatpush.msra.mxu0 0.0
      %850 = vmatpush.msra.mxu0 0.0
      %851 = vmatpush.msra.mxu0 0.0
      %852 = vmatpush.msra.mxu0 0.0
      %853 = vmatpush.msra.mxu0 0.0
      %854 = vmatpush.msra.mxu0 0.0
      %855 = vmatpush.msra.mxu0 0.0
      %856 = vmatpush.msra.mxu0 0.0
      %857 = vmatpush.msra.mxu0 0.0
      %858 = vmatpush.msra.mxu0 0.0
      %859 = vmatpush.msra.mxu0 %v842
      %860 = vmatmul.f32.gmra.mxu0 %v794
      %v861 = vpop.f32.mrf.mxu0
      %v862 = vadd.f32 0.0, %v861
      %863 = vmatmul.f32.gmra.mxu0 %v797
      %v864 = vpop.f32.mrf.mxu0
      %v865 = vadd.f32 0.0, %v864
      %866 = vmatmul.f32.gmra.mxu0 %v800
      %v867 = vpop.f32.mrf.mxu0
      %v868 = vadd.f32 0.0, %v867
      %869 = vmatmul.f32.gmra.mxu0 %v803
      %v870 = vpop.f32.mrf.mxu0
      %v871 = vadd.f32 0.0, %v870
      %872 = vmatmul.f32.gmra.mxu0 %v806
      %v873 = vpop.f32.mrf.mxu0
      %v874 = vadd.f32 0.0, %v873
      %875 = vmatmul.f32.gmra.mxu0 %v809
      %v876 = vpop.f32.mrf.mxu0
      %v877 = vadd.f32 0.0, %v876
      %878 = vmatmul.f32.gmra.mxu0 %v812
      %v879 = vpop.f32.mrf.mxu0
      %v880 = vadd.f32 0.0, %v879
      %881 = vmatmul.f32.gmra.mxu0 %v815
      %v882 = vpop.f32.mrf.mxu0
      %v883 = vadd.f32 0.0, %v882
      %884 = vmatmul.f32.gmra.mxu0 %v818
      %v885 = vpop.f32.mrf.mxu0
      %v886 = vadd.f32 0.0, %v885
      %887 = vmatmul.f32.gmra.mxu0 %v821
      %v888 = vpop.f32.mrf.mxu0
      %v889 = vadd.f32 0.0, %v888
      %890 = vmatmul.f32.gmra.mxu0 %v824
      %v891 = vpop.f32.mrf.mxu0
      %v892 = vadd.f32 0.0, %v891
      %893 = vmatmul.f32.gmra.mxu0 %v827
      %v894 = vpop.f32.mrf.mxu0
      %v895 = vadd.f32 0.0, %v894
      %896 = vmatmul.f32.gmra.mxu0 %v830
      %v897 = vpop.f32.mrf.mxu0
      %v898 = vadd.f32 0.0, %v897
      %899 = vmatmul.f32.gmra.mxu0 %v833
      %v900 = vpop.f32.mrf.mxu0
      %v901 = vadd.f32 0.0, %v900
      %902 = vmatmul.f32.gmra.mxu0 %v836
      %v903 = vpop.f32.mrf.mxu0
      %v904 = vadd.f32 0.0, %v903
      %905 = vmatmul.f32.gmra.mxu0 %v839
      %v906 = vpop.f32.mrf.mxu0
      %v907 = vadd.f32 0.0, %v906
      %908 = vdwg.mxu0
      %v909 = vadd.f32 %v759, %v862
      %v910 = vadd.f32 %v760, %v865
      %v911 = vadd.f32 %v761, %v868
      %v912 = vadd.f32 %v762, %v871
      %v913 = vadd.f32 %v763, %v874
      %v914 = vadd.f32 %v764, %v877
      %v915 = vadd.f32 %v765, %v880
      %v916 = vadd.f32 %v766, %v883
      %v917 = vadd.f32 %v767, %v886
      %v918 = vadd.f32 %v768, %v889
      %v919 = vadd.f32 %v769, %v892
      %v920 = vadd.f32 %v770, %v895
      %v921 = vadd.f32 %v771, %v898
      %v922 = vadd.f32 %v772, %v901
      %v923 = vadd.f32 %v773, %v904
      %v924 = vadd.f32 %v774, %v907
      %v925 = vld [vmem:[#allocation2 + $0x13] sm:$0xff]
      %v926 = vld [vmem:[#allocation2 + $0x1b] sm:$0xff]
      %v927 = vld [vmem:[#allocation2 + $0x23] sm:$0xff]
      %v928 = vld [vmem:[#allocation2 + $0x2b] sm:$0xff]
      %v929 = vld [vmem:[#allocation2 + $0x33] sm:$0xff]
      %v930 = vld [vmem:[#allocation2 + $0x3b] sm:$0xff]
      %v931 = vld [vmem:[#allocation2 + $0x43] sm:$0xff]
      %v932 = vld [vmem:[#allocation2 + $0x4b] sm:$0xff]
      %v933 = vld [vmem:[#allocation2 + $0x53] sm:$0xff]
      %v934 = vld [vmem:[#allocation2 + $0x5b] sm:$0xff]
      %v935 = vld [vmem:[#allocation2 + $0x63] sm:$0xff]
      %v936 = vld [vmem:[#allocation2 + $0x6b] sm:$0xff]
      %v937 = vld [vmem:[#allocation2 + $0x73] sm:$0xff]
      %v938 = vld [vmem:[#allocation2 + $0x7b] sm:$0xff]
      %v939 = vld [vmem:[#allocation2 + $0x83] sm:$0xff]
      %v940 = vld [vmem:[#allocation2 + $0x8b] sm:$0xff]
      %s941 = scalar_lea.vmem %s2, 16
      %v942 = vld [vmem:[%s941] sm:$0xf]
      %v944 = vsel %vm324, %v925, 0
      %v947 = vsel %vm324, %v926, 0
      %v950 = vsel %vm324, %v927, 0
      %v953 = vsel %vm324, %v928, 0
      %v956 = vsel %vm324, %v929, 0
      %v959 = vsel %vm324, %v930, 0
      %v962 = vsel %vm324, %v931, 0
      %v965 = vsel %vm324, %v932, 0
      %v968 = vsel %vm324, %v933, 0
      %v971 = vsel %vm324, %v934, 0
      %v974 = vsel %vm324, %v935, 0
      %v977 = vsel %vm324, %v936, 0
      %v980 = vsel %vm324, %v937, 0
      %v983 = vsel %vm324, %v938, 0
      %v986 = vsel %vm324, %v939, 0
      %v989 = vsel %vm324, %v940, 0
      %v992 = vsel %vm440, %v942, 0
      %994 = vmatpush.msra.mxu0 0.0
      %995 = vmatpush.msra.mxu0 0.0
      %996 = vmatpush.msra.mxu0 0.0
      %997 = vmatpush.msra.mxu0 0.0
      %998 = vmatpush.msra.mxu0 0.0
      %999 = vmatpush.msra.mxu0 0.0
      %1000 = vmatpush.msra.mxu0 0.0
      %1001 = vmatpush.msra.mxu0 0.0
      %1002 = vmatpush.msra.mxu0 0.0
      %1003 = vmatpush.msra.mxu0 0.0
      %1004 = vmatpush.msra.mxu0 0.0
      %1005 = vmatpush.msra.mxu0 0.0
      %1006 = vmatpush.msra.mxu0 0.0
      %1007 = vmatpush.msra.mxu0 0.0
      %1008 = vmatpush.msra.mxu0 0.0
      %1009 = vmatpush.msra.mxu0 %v992
      %1010 = vmatmul.f32.gmra.mxu0 %v944
      %v1011 = vpop.f32.mrf.mxu0
      %v1012 = vadd.f32 0.0, %v1011
      %1013 = vmatmul.f32.gmra.mxu0 %v947
      %v1014 = vpop.f32.mrf.mxu0
      %v1015 = vadd.f32 0.0, %v1014
      %1016 = vmatmul.f32.gmra.mxu0 %v950
      %v1017 = vpop.f32.mrf.mxu0
      %v1018 = vadd.f32 0.0, %v1017
      %1019 = vmatmul.f32.gmra.mxu0 %v953
      %v1020 = vpop.f32.mrf.mxu0
      %v1021 = vadd.f32 0.0, %v1020
      %1022 = vmatmul.f32.gmra.mxu0 %v956
      %v1023 = vpop.f32.mrf.mxu0
      %v1024 = vadd.f32 0.0, %v1023
      %1025 = vmatmul.f32.gmra.mxu0 %v959
      %v1026 = vpop.f32.mrf.mxu0
      %v1027 = vadd.f32 0.0, %v1026
      %1028 = vmatmul.f32.gmra.mxu0 %v962
      %v1029 = vpop.f32.mrf.mxu0
      %v1030 = vadd.f32 0.0, %v1029
      %1031 = vmatmul.f32.gmra.mxu0 %v965
      %v1032 = vpop.f32.mrf.mxu0
      %v1033 = vadd.f32 0.0, %v1032
      %1034 = vmatmul.f32.gmra.mxu0 %v968
      %v1035 = vpop.f32.mrf.mxu0
      %v1036 = vadd.f32 0.0, %v1035
      %1037 = vmatmul.f32.gmra.mxu0 %v971
      %v1038 = vpop.f32.mrf.mxu0
      %v1039 = vadd.f32 0.0, %v1038
      %1040 = vmatmul.f32.gmra.mxu0 %v974
      %v1041 = vpop.f32.mrf.mxu0
      %v1042 = vadd.f32 0.0, %v1041
      %1043 = vmatmul.f32.gmra.mxu0 %v977
      %v1044 = vpop.f32.mrf.mxu0
      %v1045 = vadd.f32 0.0, %v1044
      %1046 = vmatmul.f32.gmra.mxu0 %v980
      %v1047 = vpop.f32.mrf.mxu0
      %v1048 = vadd.f32 0.0, %v1047
      %1049 = vmatmul.f32.gmra.mxu0 %v983
      %v1050 = vpop.f32.mrf.mxu0
      %v1051 = vadd.f32 0.0, %v1050
      %1052 = vmatmul.f32.gmra.mxu0 %v986
      %v1053 = vpop.f32.mrf.mxu0
      %v1054 = vadd.f32 0.0, %v1053
      %1055 = vmatmul.f32.gmra.mxu0 %v989
      %v1056 = vpop.f32.mrf.mxu0
      %v1057 = vadd.f32 0.0, %v1056
      %1058 = vdwg.mxu0
      %v1059 = vadd.f32 %v909, %v1012
      %v1060 = vadd.f32 %v910, %v1015
      %v1061 = vadd.f32 %v911, %v1018
      %v1062 = vadd.f32 %v912, %v1021
      %v1063 = vadd.f32 %v913, %v1024
      %v1064 = vadd.f32 %v914, %v1027
      %v1065 = vadd.f32 %v915, %v1030
      %v1066 = vadd.f32 %v916, %v1033
      %v1067 = vadd.f32 %v917, %v1036
      %v1068 = vadd.f32 %v918, %v1039
      %v1069 = vadd.f32 %v919, %v1042
      %v1070 = vadd.f32 %v920, %v1045
      %v1071 = vadd.f32 %v921, %v1048
      %v1072 = vadd.f32 %v922, %v1051
      %v1073 = vadd.f32 %v923, %v1054
      %v1074 = vadd.f32 %v924, %v1057
      %v1075 = vld [vmem:[#allocation2 + $0x14] sm:$0xff]
      %v1076 = vld [vmem:[#allocation2 + $0x1c] sm:$0xff]
      %v1077 = vld [vmem:[#allocation2 + $0x24] sm:$0xff]
      %v1078 = vld [vmem:[#allocation2 + $0x2c] sm:$0xff]
      %v1079 = vld [vmem:[#allocation2 + $0x34] sm:$0xff]
      %v1080 = vld [vmem:[#allocation2 + $0x3c] sm:$0xff]
      %v1081 = vld [vmem:[#allocation2 + $0x44] sm:$0xff]
      %v1082 = vld [vmem:[#allocation2 + $0x4c] sm:$0xff]
      %v1083 = vld [vmem:[#allocation2 + $0x54] sm:$0xff]
      %v1084 = vld [vmem:[#allocation2 + $0x5c] sm:$0xff]
      %v1085 = vld [vmem:[#allocation2 + $0x64] sm:$0xff]
      %v1086 = vld [vmem:[#allocation2 + $0x6c] sm:$0xff]
      %v1087 = vld [vmem:[#allocation2 + $0x74] sm:$0xff]
      %v1088 = vld [vmem:[#allocation2 + $0x7c] sm:$0xff]
      %v1089 = vld [vmem:[#allocation2 + $0x84] sm:$0xff]
      %v1090 = vld [vmem:[#allocation2 + $0x8c] sm:$0xff]
      %s1091 = scalar_lea.vmem %s2, 20
      %v1092 = vld [vmem:[%s1091] sm:$0xf]
      %v1094 = vsel %vm324, %v1075, 0
      %v1097 = vsel %vm324, %v1076, 0
      %v1100 = vsel %vm324, %v1077, 0
      %v1103 = vsel %vm324, %v1078, 0
      %v1106 = vsel %vm324, %v1079, 0
      %v1109 = vsel %vm324, %v1080, 0
      %v1112 = vsel %vm324, %v1081, 0
      %v1115 = vsel %vm324, %v1082, 0
      %v1118 = vsel %vm324, %v1083, 0
      %v1121 = vsel %vm324, %v1084, 0
      %v1124 = vsel %vm324, %v1085, 0
      %v1127 = vsel %vm324, %v1086, 0
      %v1130 = vsel %vm324, %v1087, 0
      %v1133 = vsel %vm324, %v1088, 0
      %v1136 = vsel %vm324, %v1089, 0
      %v1139 = vsel %vm324, %v1090, 0
      %v1142 = vsel %vm440, %v1092, 0
      %1144 = vmatpush.msra.mxu0 0.0
      %1145 = vmatpush.msra.mxu0 0.0
      %1146 = vmatpush.msra.mxu0 0.0
      %1147 = vmatpush.msra.mxu0 0.0
      %1148 = vmatpush.msra.mxu0 0.0
      %1149 = vmatpush.msra.mxu0 0.0
      %1150 = vmatpush.msra.mxu0 0.0
      %1151 = vmatpush.msra.mxu0 0.0
      %1152 = vmatpush.msra.mxu0 0.0
      %1153 = vmatpush.msra.mxu0 0.0
      %1154 = vmatpush.msra.mxu0 0.0
      %1155 = vmatpush.msra.mxu0 0.0
      %1156 = vmatpush.msra.mxu0 0.0
      %1157 = vmatpush.msra.mxu0 0.0
      %1158 = vmatpush.msra.mxu0 0.0
      %1159 = vmatpush.msra.mxu0 %v1142
      %1160 = vmatmul.f32.gmra.mxu0 %v1094
      %v1161 = vpop.f32.mrf.mxu0
      %v1162 = vadd.f32 0.0, %v1161
      %1163 = vmatmul.f32.gmra.mxu0 %v1097
      %v1164 = vpop.f32.mrf.mxu0
      %v1165 = vadd.f32 0.0, %v1164
      %1166 = vmatmul.f32.gmra.mxu0 %v1100
      %v1167 = vpop.f32.mrf.mxu0
      %v1168 = vadd.f32 0.0, %v1167
      %1169 = vmatmul.f32.gmra.mxu0 %v1103
      %v1170 = vpop.f32.mrf.mxu0
      %v1171 = vadd.f32 0.0, %v1170
      %1172 = vmatmul.f32.gmra.mxu0 %v1106
      %v1173 = vpop.f32.mrf.mxu0
      %v1174 = vadd.f32 0.0, %v1173
      %1175 = vmatmul.f32.gmra.mxu0 %v1109
      %v1176 = vpop.f32.mrf.mxu0
      %v1177 = vadd.f32 0.0, %v1176
      %1178 = vmatmul.f32.gmra.mxu0 %v1112
      %v1179 = vpop.f32.mrf.mxu0
      %v1180 = vadd.f32 0.0, %v1179
      %1181 = vmatmul.f32.gmra.mxu0 %v1115
      %v1182 = vpop.f32.mrf.mxu0
      %v1183 = vadd.f32 0.0, %v1182
      %1184 = vmatmul.f32.gmra.mxu0 %v1118
      %v1185 = vpop.f32.mrf.mxu0
      %v1186 = vadd.f32 0.0, %v1185
      %1187 = vmatmul.f32.gmra.mxu0 %v1121
      %v1188 = vpop.f32.mrf.mxu0
      %v1189 = vadd.f32 0.0, %v1188
      %1190 = vmatmul.f32.gmra.mxu0 %v1124
      %v1191 = vpop.f32.mrf.mxu0
      %v1192 = vadd.f32 0.0, %v1191
      %1193 = vmatmul.f32.gmra.mxu0 %v1127
      %v1194 = vpop.f32.mrf.mxu0
      %v1195 = vadd.f32 0.0, %v1194
      %1196 = vmatmul.f32.gmra.mxu0 %v1130
      %v1197 = vpop.f32.mrf.mxu0
      %v1198 = vadd.f32 0.0, %v1197
      %1199 = vmatmul.f32.gmra.mxu0 %v1133
      %v1200 = vpop.f32.mrf.mxu0
      %v1201 = vadd.f32 0.0, %v1200
      %1202 = vmatmul.f32.gmra.mxu0 %v1136
      %v1203 = vpop.f32.mrf.mxu0
      %v1204 = vadd.f32 0.0, %v1203
      %1205 = vmatmul.f32.gmra.mxu0 %v1139
      %v1206 = vpop.f32.mrf.mxu0
      %v1207 = vadd.f32 0.0, %v1206
      %1208 = vdwg.mxu0
      %v1209 = vadd.f32 %v1059, %v1162
      %v1210 = vadd.f32 %v1060, %v1165
      %v1211 = vadd.f32 %v1061, %v1168
      %v1212 = vadd.f32 %v1062, %v1171
      %v1213 = vadd.f32 %v1063, %v1174
      %v1214 = vadd.f32 %v1064, %v1177
      %v1215 = vadd.f32 %v1065, %v1180
      %v1216 = vadd.f32 %v1066, %v1183
      %v1217 = vadd.f32 %v1067, %v1186
      %v1218 = vadd.f32 %v1068, %v1189
      %v1219 = vadd.f32 %v1069, %v1192
      %v1220 = vadd.f32 %v1070, %v1195
      %v1221 = vadd.f32 %v1071, %v1198
      %v1222 = vadd.f32 %v1072, %v1201
      %v1223 = vadd.f32 %v1073, %v1204
      %v1224 = vadd.f32 %v1074, %v1207
      %v1225 = vld [vmem:[#allocation2 + $0x24] sm:$0xff]
      %v1226 = vld [vmem:[#allocation2 + $0x2c] sm:$0xff]
      %v1227 = vld [vmem:[#allocation2 + $0x34] sm:$0xff]
      %v1228 = vld [vmem:[#allocation2 + $0x3c] sm:$0xff]
      %v1229 = vld [vmem:[#allocation2 + $0x44] sm:$0xff]
      %v1230 = vld [vmem:[#allocation2 + $0x4c] sm:$0xff]
      %v1231 = vld [vmem:[#allocation2 + $0x54] sm:$0xff]
      %v1232 = vld [vmem:[#allocation2 + $0x5c] sm:$0xff]
      %v1233 = vld [vmem:[#allocation2 + $0x64] sm:$0xff]
      %v1234 = vld [vmem:[#allocation2 + $0x6c] sm:$0xff]
      %v1235 = vld [vmem:[#allocation2 + $0x74] sm:$0xff]
      %v1236 = vld [vmem:[#allocation2 + $0x7c] sm:$0xff]
      %v1237 = vld [vmem:[#allocation2 + $0x84] sm:$0xff]
      %v1238 = vld [vmem:[#allocation2 + $0x8c] sm:$0xff]
      %v1239 = vld [vmem:[#allocation2 + $0x94] sm:$0xff]
      %v1240 = vld [vmem:[#allocation2 + $0x9c] sm:$0xff]
      %s1241 = scalar_lea.vmem %s2, 24
      %v1242 = vld [vmem:[%s1241] sm:$0xf]
      %v1244 = vsel %vm324, %v1225, 0
      %v1247 = vsel %vm324, %v1226, 0
      %v1250 = vsel %vm324, %v1227, 0
      %v1253 = vsel %vm324, %v1228, 0
      %v1256 = vsel %vm324, %v1229, 0
      %v1259 = vsel %vm324, %v1230, 0
      %v1262 = vsel %vm324, %v1231, 0
      %v1265 = vsel %vm324, %v1232, 0
      %v1268 = vsel %vm324, %v1233, 0
      %v1271 = vsel %vm324, %v1234, 0
      %v1274 = vsel %vm324, %v1235, 0
      %v1277 = vsel %vm324, %v1236, 0
      %v1280 = vsel %vm324, %v1237, 0
      %v1283 = vsel %vm324, %v1238, 0
      %v1286 = vsel %vm324, %v1239, 0
      %v1289 = vsel %vm324, %v1240, 0
      %v1292 = vsel %vm440, %v1242, 0
      %1294 = vmatpush.msra.mxu0 0.0
      %1295 = vmatpush.msra.mxu0 0.0
      %1296 = vmatpush.msra.mxu0 0.0
      %1297 = vmatpush.msra.mxu0 0.0
      %1298 = vmatpush.msra.mxu0 0.0
      %1299 = vmatpush.msra.mxu0 0.0
      %1300 = vmatpush.msra.mxu0 0.0
      %1301 = vmatpush.msra.mxu0 0.0
      %1302 = vmatpush.msra.mxu0 0.0
      %1303 = vmatpush.msra.mxu0 0.0
      %1304 = vmatpush.msra.mxu0 0.0
      %1305 = vmatpush.msra.mxu0 0.0
      %1306 = vmatpush.msra.mxu0 0.0
      %1307 = vmatpush.msra.mxu0 0.0
      %1308 = vmatpush.msra.mxu0 0.0
      %1309 = vmatpush.msra.mxu0 %v1292
      %1310 = vmatmul.f32.gmra.mxu0 %v1244
      %v1311 = vpop.f32.mrf.mxu0
      %v1312 = vadd.f32 0.0, %v1311
      %1313 = vmatmul.f32.gmra.mxu0 %v1247
      %v1314 = vpop.f32.mrf.mxu0
      %v1315 = vadd.f32 0.0, %v1314
      %1316 = vmatmul.f32.gmra.mxu0 %v1250
      %v1317 = vpop.f32.mrf.mxu0
      %v1318 = vadd.f32 0.0, %v1317
      %1319 = vmatmul.f32.gmra.mxu0 %v1253
      %v1320 = vpop.f32.mrf.mxu0
      %v1321 = vadd.f32 0.0, %v1320
      %1322 = vmatmul.f32.gmra.mxu0 %v1256
      %v1323 = vpop.f32.mrf.mxu0
      %v1324 = vadd.f32 0.0, %v1323
      %1325 = vmatmul.f32.gmra.mxu0 %v1259
      %v1326 = vpop.f32.mrf.mxu0
      %v1327 = vadd.f32 0.0, %v1326
      %1328 = vmatmul.f32.gmra.mxu0 %v1262
      %v1329 = vpop.f32.mrf.mxu0
      %v1330 = vadd.f32 0.0, %v1329
      %1331 = vmatmul.f32.gmra.mxu0 %v1265
      %v1332 = vpop.f32.mrf.mxu0
      %v1333 = vadd.f32 0.0, %v1332
      %1334 = vmatmul.f32.gmra.mxu0 %v1268
      %v1335 = vpop.f32.mrf.mxu0
      %v1336 = vadd.f32 0.0, %v1335
      %1337 = vmatmul.f32.gmra.mxu0 %v1271
      %v1338 = vpop.f32.mrf.mxu0
      %v1339 = vadd.f32 0.0, %v1338
      %1340 = vmatmul.f32.gmra.mxu0 %v1274
      %v1341 = vpop.f32.mrf.mxu0
      %v1342 = vadd.f32 0.0, %v1341
      %1343 = vmatmul.f32.gmra.mxu0 %v1277
      %v1344 = vpop.f32.mrf.mxu0
      %v1345 = vadd.f32 0.0, %v1344
      %1346 = vmatmul.f32.gmra.mxu0 %v1280
      %v1347 = vpop.f32.mrf.mxu0
      %v1348 = vadd.f32 0.0, %v1347
      %1349 = vmatmul.f32.gmra.mxu0 %v1283
      %v1350 = vpop.f32.mrf.mxu0
      %v1351 = vadd.f32 0.0, %v1350
      %1352 = vmatmul.f32.gmra.mxu0 %v1286
      %v1353 = vpop.f32.mrf.mxu0
      %v1354 = vadd.f32 0.0, %v1353
      %1355 = vmatmul.f32.gmra.mxu0 %v1289
      %v1356 = vpop.f32.mrf.mxu0
      %v1357 = vadd.f32 0.0, %v1356
      %1358 = vdwg.mxu0
      %v1359 = vadd.f32 %v1209, %v1312
      %v1360 = vadd.f32 %v1210, %v1315
      %v1361 = vadd.f32 %v1211, %v1318
      %v1362 = vadd.f32 %v1212, %v1321
      %v1363 = vadd.f32 %v1213, %v1324
      %v1364 = vadd.f32 %v1214, %v1327
      %v1365 = vadd.f32 %v1215, %v1330
      %v1366 = vadd.f32 %v1216, %v1333
      %v1367 = vadd.f32 %v1217, %v1336
      %v1368 = vadd.f32 %v1218, %v1339
      %v1369 = vadd.f32 %v1219, %v1342
      %v1370 = vadd.f32 %v1220, %v1345
      %v1371 = vadd.f32 %v1221, %v1348
      %v1372 = vadd.f32 %v1222, %v1351
      %v1373 = vadd.f32 %v1223, %v1354
      %v1374 = vadd.f32 %v1224, %v1357
      %v1375 = vld [vmem:[#allocation2 + $0x25] sm:$0xff]
      %v1376 = vld [vmem:[#allocation2 + $0x2d] sm:$0xff]
      %v1377 = vld [vmem:[#allocation2 + $0x35] sm:$0xff]
      %v1378 = vld [vmem:[#allocation2 + $0x3d] sm:$0xff]
      %v1379 = vld [vmem:[#allocation2 + $0x45] sm:$0xff]
      %v1380 = vld [vmem:[#allocation2 + $0x4d] sm:$0xff]
      %v1381 = vld [vmem:[#allocation2 + $0x55] sm:$0xff]
      %v1382 = vld [vmem:[#allocation2 + $0x5d] sm:$0xff]
      %v1383 = vld [vmem:[#allocation2 + $0x65] sm:$0xff]
      %v1384 = vld [vmem:[#allocation2 + $0x6d] sm:$0xff]
      %v1385 = vld [vmem:[#allocation2 + $0x75] sm:$0xff]
      %v1386 = vld [vmem:[#allocation2 + $0x7d] sm:$0xff]
      %v1387 = vld [vmem:[#allocation2 + $0x85] sm:$0xff]
      %v1388 = vld [vmem:[#allocation2 + $0x8d] sm:$0xff]
      %v1389 = vld [vmem:[#allocation2 + $0x95] sm:$0xff]
      %v1390 = vld [vmem:[#allocation2 + $0x9d] sm:$0xff]
      %s1391 = scalar_lea.vmem %s2, 28
      %v1392 = vld [vmem:[%s1391] sm:$0xf]
      %v1394 = vsel %vm324, %v1375, 0
      %v1397 = vsel %vm324, %v1376, 0
      %v1400 = vsel %vm324, %v1377, 0
      %v1403 = vsel %vm324, %v1378, 0
      %v1406 = vsel %vm324, %v1379, 0
      %v1409 = vsel %vm324, %v1380, 0
      %v1412 = vsel %vm324, %v1381, 0
      %v1415 = vsel %vm324, %v1382, 0
      %v1418 = vsel %vm324, %v1383, 0
      %v1421 = vsel %vm324, %v1384, 0
      %v1424 = vsel %vm324, %v1385, 0
      %v1427 = vsel %vm324, %v1386, 0
      %v1430 = vsel %vm324, %v1387, 0
      %v1433 = vsel %vm324, %v1388, 0
      %v1436 = vsel %vm324, %v1389, 0
      %v1439 = vsel %vm324, %v1390, 0
      %v1442 = vsel %vm440, %v1392, 0
      %1444 = vmatpush.msra.mxu0 0.0
      %1445 = vmatpush.msra.mxu0 0.0
      %1446 = vmatpush.msra.mxu0 0.0
      %1447 = vmatpush.msra.mxu0 0.0
      %1448 = vmatpush.msra.mxu0 0.0
      %1449 = vmatpush.msra.mxu0 0.0
      %1450 = vmatpush.msra.mxu0 0.0
      %1451 = vmatpush.msra.mxu0 0.0
      %1452 = vmatpush.msra.mxu0 0.0
      %1453 = vmatpush.msra.mxu0 0.0
      %1454 = vmatpush.msra.mxu0 0.0
      %1455 = vmatpush.msra.mxu0 0.0
      %1456 = vmatpush.msra.mxu0 0.0
      %1457 = vmatpush.msra.mxu0 0.0
      %1458 = vmatpush.msra.mxu0 0.0
      %1459 = vmatpush.msra.mxu0 %v1442
      %1460 = vmatmul.f32.gmra.mxu0 %v1394
      %v1461 = vpop.f32.mrf.mxu0
      %v1462 = vadd.f32 0.0, %v1461
      %1463 = vmatmul.f32.gmra.mxu0 %v1397
      %v1464 = vpop.f32.mrf.mxu0
      %v1465 = vadd.f32 0.0, %v1464
      %1466 = vmatmul.f32.gmra.mxu0 %v1400
      %v1467 = vpop.f32.mrf.mxu0
      %v1468 = vadd.f32 0.0, %v1467
      %1469 = vmatmul.f32.gmra.mxu0 %v1403
      %v1470 = vpop.f32.mrf.mxu0
      %v1471 = vadd.f32 0.0, %v1470
      %1472 = vmatmul.f32.gmra.mxu0 %v1406
      %v1473 = vpop.f32.mrf.mxu0
      %v1474 = vadd.f32 0.0, %v1473
      %1475 = vmatmul.f32.gmra.mxu0 %v1409
      %v1476 = vpop.f32.mrf.mxu0
      %v1477 = vadd.f32 0.0, %v1476
      %1478 = vmatmul.f32.gmra.mxu0 %v1412
      %v1479 = vpop.f32.mrf.mxu0
      %v1480 = vadd.f32 0.0, %v1479
      %1481 = vmatmul.f32.gmra.mxu0 %v1415
      %v1482 = vpop.f32.mrf.mxu0
      %v1483 = vadd.f32 0.0, %v1482
      %1484 = vmatmul.f32.gmra.mxu0 %v1418
      %v1485 = vpop.f32.mrf.mxu0
      %v1486 = vadd.f32 0.0, %v1485
      %1487 = vmatmul.f32.gmra.mxu0 %v1421
      %v1488 = vpop.f32.mrf.mxu0
      %v1489 = vadd.f32 0.0, %v1488
      %1490 = vmatmul.f32.gmra.mxu0 %v1424
      %v1491 = vpop.f32.mrf.mxu0
      %v1492 = vadd.f32 0.0, %v1491
      %1493 = vmatmul.f32.gmra.mxu0 %v1427
      %v1494 = vpop.f32.mrf.mxu0
      %v1495 = vadd.f32 0.0, %v1494
      %1496 = vmatmul.f32.gmra.mxu0 %v1430
      %v1497 = vpop.f32.mrf.mxu0
      %v1498 = vadd.f32 0.0, %v1497
      %1499 = vmatmul.f32.gmra.mxu0 %v1433
      %v1500 = vpop.f32.mrf.mxu0
      %v1501 = vadd.f32 0.0, %v1500
      %1502 = vmatmul.f32.gmra.mxu0 %v1436
      %v1503 = vpop.f32.mrf.mxu0
      %v1504 = vadd.f32 0.0, %v1503
      %1505 = vmatmul.f32.gmra.mxu0 %v1439
      %v1506 = vpop.f32.mrf.mxu0
      %v1507 = vadd.f32 0.0, %v1506
      %1508 = vdwg.mxu0
      %v1509 = vadd.f32 %v1359, %v1462
      %v1510 = vadd.f32 %v1360, %v1465
      %v1511 = vadd.f32 %v1361, %v1468
      %v1512 = vadd.f32 %v1362, %v1471
      %v1513 = vadd.f32 %v1363, %v1474
      %v1514 = vadd.f32 %v1364, %v1477
      %v1515 = vadd.f32 %v1365, %v1480
      %v1516 = vadd.f32 %v1366, %v1483
      %v1517 = vadd.f32 %v1367, %v1486
      %v1518 = vadd.f32 %v1368, %v1489
      %v1519 = vadd.f32 %v1369, %v1492
      %v1520 = vadd.f32 %v1370, %v1495
      %v1521 = vadd.f32 %v1371, %v1498
      %v1522 = vadd.f32 %v1372, %v1501
      %v1523 = vadd.f32 %v1373, %v1504
      %v1524 = vadd.f32 %v1374, %v1507
      %v1525 = vld [vmem:[#allocation2 + $0x26] sm:$0xff]
      %v1526 = vld [vmem:[#allocation2 + $0x2e] sm:$0xff]
      %v1527 = vld [vmem:[#allocation2 + $0x36] sm:$0xff]
      %v1528 = vld [vmem:[#allocation2 + $0x3e] sm:$0xff]
      %v1529 = vld [vmem:[#allocation2 + $0x46] sm:$0xff]
      %v1530 = vld [vmem:[#allocation2 + $0x4e] sm:$0xff]
      %v1531 = vld [vmem:[#allocation2 + $0x56] sm:$0xff]
      %v1532 = vld [vmem:[#allocation2 + $0x5e] sm:$0xff]
      %v1533 = vld [vmem:[#allocation2 + $0x66] sm:$0xff]
      %v1534 = vld [vmem:[#allocation2 + $0x6e] sm:$0xff]
      %v1535 = vld [vmem:[#allocation2 + $0x76] sm:$0xff]
      %v1536 = vld [vmem:[#allocation2 + $0x7e] sm:$0xff]
      %v1537 = vld [vmem:[#allocation2 + $0x86] sm:$0xff]
      %v1538 = vld [vmem:[#allocation2 + $0x8e] sm:$0xff]
      %v1539 = vld [vmem:[#allocation2 + $0x96] sm:$0xff]
      %v1540 = vld [vmem:[#allocation2 + $0x9e] sm:$0xff]
      %s1541 = scalar_lea.vmem %s2, 32
      %v1542 = vld [vmem:[%s1541] sm:$0xf]
      %v1544 = vsel %vm324, %v1525, 0
      %v1547 = vsel %vm324, %v1526, 0
      %v1550 = vsel %vm324, %v1527, 0
      %v1553 = vsel %vm324, %v1528, 0
      %v1556 = vsel %vm324, %v1529, 0
      %v1559 = vsel %vm324, %v1530, 0
      %v1562 = vsel %vm324, %v1531, 0
      %v1565 = vsel %vm324, %v1532, 0
      %v1568 = vsel %vm324, %v1533, 0
      %v1571 = vsel %vm324, %v1534, 0
      %v1574 = vsel %vm324, %v1535, 0
      %v1577 = vsel %vm324, %v1536, 0
      %v1580 = vsel %vm324, %v1537, 0
      %v1583 = vsel %vm324, %v1538, 0
      %v1586 = vsel %vm324, %v1539, 0
      %v1589 = vsel %vm324, %v1540, 0
      %v1592 = vsel %vm440, %v1542, 0
      %1594 = vmatpush.msra.mxu0 0.0
      %1595 = vmatpush.msra.mxu0 0.0
      %1596 = vmatpush.msra.mxu0 0.0
      %1597 = vmatpush.msra.mxu0 0.0
      %1598 = vmatpush.msra.mxu0 0.0
      %1599 = vmatpush.msra.mxu0 0.0
      %1600 = vmatpush.msra.mxu0 0.0
      %1601 = vmatpush.msra.mxu0 0.0
      %1602 = vmatpush.msra.mxu0 0.0
      %1603 = vmatpush.msra.mxu0 0.0
      %1604 = vmatpush.msra.mxu0 0.0
      %1605 = vmatpush.msra.mxu0 0.0
      %1606 = vmatpush.msra.mxu0 0.0
      %1607 = vmatpush.msra.mxu0 0.0
      %1608 = vmatpush.msra.mxu0 0.0
      %1609 = vmatpush.msra.mxu0 %v1592
      %1610 = vmatmul.f32.gmra.mxu0 %v1544
      %v1611 = vpop.f32.mrf.mxu0
      %v1612 = vadd.f32 0.0, %v1611
      %1613 = vmatmul.f32.gmra.mxu0 %v1547
      %v1614 = vpop.f32.mrf.mxu0
      %v1615 = vadd.f32 0.0, %v1614
      %1616 = vmatmul.f32.gmra.mxu0 %v1550
      %v1617 = vpop.f32.mrf.mxu0
      %v1618 = vadd.f32 0.0, %v1617
      %1619 = vmatmul.f32.gmra.mxu0 %v1553
      %v1620 = vpop.f32.mrf.mxu0
      %v1621 = vadd.f32 0.0, %v1620
      %1622 = vmatmul.f32.gmra.mxu0 %v1556
      %v1623 = vpop.f32.mrf.mxu0
      %v1624 = vadd.f32 0.0, %v1623
      %1625 = vmatmul.f32.gmra.mxu0 %v1559
      %v1626 = vpop.f32.mrf.mxu0
      %v1627 = vadd.f32 0.0, %v1626
      %1628 = vmatmul.f32.gmra.mxu0 %v1562
      %v1629 = vpop.f32.mrf.mxu0
      %v1630 = vadd.f32 0.0, %v1629
      %1631 = vmatmul.f32.gmra.mxu0 %v1565
      %v1632 = vpop.f32.mrf.mxu0
      %v1633 = vadd.f32 0.0, %v1632
      %1634 = vmatmul.f32.gmra.mxu0 %v1568
      %v1635 = vpop.f32.mrf.mxu0
      %v1636 = vadd.f32 0.0, %v1635
      %1637 = vmatmul.f32.gmra.mxu0 %v1571
      %v1638 = vpop.f32.mrf.mxu0
      %v1639 = vadd.f32 0.0, %v1638
      %1640 = vmatmul.f32.gmra.mxu0 %v1574
      %v1641 = vpop.f32.mrf.mxu0
      %v1642 = vadd.f32 0.0, %v1641
      %1643 = vmatmul.f32.gmra.mxu0 %v1577
      %v1644 = vpop.f32.mrf.mxu0
      %v1645 = vadd.f32 0.0, %v1644
      %1646 = vmatmul.f32.gmra.mxu0 %v1580
      %v1647 = vpop.f32.mrf.mxu0
      %v1648 = vadd.f32 0.0, %v1647
      %1649 = vmatmul.f32.gmra.mxu0 %v1583
      %v1650 = vpop.f32.mrf.mxu0
      %v1651 = vadd.f32 0.0, %v1650
      %1652 = vmatmul.f32.gmra.mxu0 %v1586
      %v1653 = vpop.f32.mrf.mxu0
      %v1654 = vadd.f32 0.0, %v1653
      %1655 = vmatmul.f32.gmra.mxu0 %v1589
      %v1656 = vpop.f32.mrf.mxu0
      %v1657 = vadd.f32 0.0, %v1656
      %1658 = vdwg.mxu0
      %v1659 = vadd.f32 %v1509, %v1612
      %v1660 = vadd.f32 %v1510, %v1615
      %v1661 = vadd.f32 %v1511, %v1618
      %v1662 = vadd.f32 %v1512, %v1621
      %v1663 = vadd.f32 %v1513, %v1624
      %v1664 = vadd.f32 %v1514, %v1627
      %v1665 = vadd.f32 %v1515, %v1630
      %v1666 = vadd.f32 %v1516, %v1633
      %v1667 = vadd.f32 %v1517, %v1636
      %v1668 = vadd.f32 %v1518, %v1639
      %v1669 = vadd.f32 %v1519, %v1642
      %v1670 = vadd.f32 %v1520, %v1645
      %v1671 = vadd.f32 %v1521, %v1648
      %v1672 = vadd.f32 %v1522, %v1651
      %v1673 = vadd.f32 %v1523, %v1654
      %v1674 = vadd.f32 %v1524, %v1657
      %1675 = vst [vmem:[%s298] sm:$0xff] %v1659
      %1676 = vst [vmem:[%s298 + $0x8] sm:$0xff] %v1660
      %1677 = vst [vmem:[%s298 + $0x10] sm:$0xff] %v1661
      %1678 = vst [vmem:[%s298 + $0x18] sm:$0xff] %v1662
      %1679 = vst [vmem:[%s298 + $0x20] sm:$0xff] %v1663
      %1680 = vst [vmem:[%s298 + $0x28] sm:$0xff] %v1664
      %1681 = vst [vmem:[%s298 + $0x30] sm:$0xff] %v1665
      %1682 = vst [vmem:[%s298 + $0x38] sm:$0xff] %v1666
      %1683 = vst [vmem:[%s298 + $0x40] sm:$0xff] %v1667
      %1684 = vst [vmem:[%s298 + $0x48] sm:$0xff] %v1668
      %1685 = vst [vmem:[%s298 + $0x50] sm:$0xff] %v1669
      %1686 = vst [vmem:[%s298 + $0x58] sm:$0xff] %v1670
      %1687 = vst [vmem:[%s298 + $0x60] sm:$0xff] %v1671
      %1688 = vst [vmem:[%s298 + $0x68] sm:$0xff] %v1672
      %1689 = vst [vmem:[%s298 + $0x70] sm:$0xff] %v1673
      %1690 = vst [vmem:[%s298 + $0x78] sm:$0xff] %v1674
      %v1691 = vld [vmem:[%s293] sm:$0x1]
      %1692 = vmatpush.msra.mxu0 %v1674
      %1693 = vmatpush.msra.mxu0 %v1673
      %1694 = vmatpush.msra.mxu0 %v1672
      %1695 = vmatpush.msra.mxu0 %v1671
      %1696 = vmatpush.msra.mxu0 %v1670
      %1697 = vmatpush.msra.mxu0 %v1669
      %1698 = vmatpush.msra.mxu0 %v1668
      %1699 = vmatpush.msra.mxu0 %v1667
      %1700 = vmatpush.msra.mxu0 %v1666
      %1701 = vmatpush.msra.mxu0 %v1665
      %1702 = vmatpush.msra.mxu0 %v1664
      %1703 = vmatpush.msra.mxu0 %v1663
      %1704 = vmatpush.msra.mxu0 %v1662
      %1705 = vmatpush.msra.mxu0 %v1661
      %1706 = vmatpush.msra.mxu0 %v1660
      %1707 = vmatpush.msra.mxu0 %v1659
      %1708 = vmatmul.f32.gmra.mxu0 %v1691
      %v1709 = vpop.f32.mrf.mxu0
      %v1710 = vadd.f32 0.0, %v1709
      %1711 = vdwg.mxu0
      %v1712 = vmul.f32 %v1659, %v1659
      %v1713 = vmul.f32 %v1660, %v1660
      %v1714 = vmul.f32 %v1661, %v1661
      %v1715 = vmul.f32 %v1662, %v1662
      %v1716 = vmul.f32 %v1663, %v1663
      %v1717 = vmul.f32 %v1664, %v1664
      %v1718 = vmul.f32 %v1665, %v1665
      %v1719 = vmul.f32 %v1666, %v1666
      %v1720 = vmul.f32 %v1667, %v1667
      %v1721 = vmul.f32 %v1668, %v1668
      %v1722 = vmul.f32 %v1669, %v1669
      %v1723 = vmul.f32 %v1670, %v1670
      %v1724 = vmul.f32 %v1671, %v1671
      %v1725 = vmul.f32 %v1672, %v1672
      %v1726 = vmul.f32 %v1673, %v1673
      %v1727 = vmul.f32 %v1674, %v1674
      %1728 = vmatpush.msra.mxu0 %v1727
      %1729 = vmatpush.msra.mxu0 %v1726
      %1730 = vmatpush.msra.mxu0 %v1725
      %1731 = vmatpush.msra.mxu0 %v1724
      %1732 = vmatpush.msra.mxu0 %v1723
      %1733 = vmatpush.msra.mxu0 %v1722
      %1734 = vmatpush.msra.mxu0 %v1721
      %1735 = vmatpush.msra.mxu0 %v1720
      %1736 = vmatpush.msra.mxu0 %v1719
      %1737 = vmatpush.msra.mxu0 %v1718
      %1738 = vmatpush.msra.mxu0 %v1717
      %1739 = vmatpush.msra.mxu0 %v1716
      %1740 = vmatpush.msra.mxu0 %v1715
      %1741 = vmatpush.msra.mxu0 %v1714
      %1742 = vmatpush.msra.mxu0 %v1713
      %1743 = vmatpush.msra.mxu0 %v1712
      %1744 = vmatmul.f32.gmra.mxu0 %v1691
      %v1745 = vpop.f32.mrf.mxu0
      %v1746 = vadd.f32 0.0, %v1745
      %1747 = vdwg.mxu0
      %vm1748 = vcmask 1040384
      %v1749 = vsel %vm1748, %v1691, 0.0
      %1750 = vadd.xlane.f32.xlu0 %v1749
      %v1751 = vpop.xlane.xlu0 %1750
      %v1752 = vrot.slane %v1751, 4
      %v1753 = vadd.f32 %v1751, %v1752
      %v1754 = vrot.slane %v1753, 2
      %v1755 = vadd.f32 %v1753, %v1754
      %v1756 = vrot.slane %v1755, 1
      %v1757 = vadd.f32 %v1755, %v1756
      %s1758 = vtos %v1757
      %s1759 = smax.f32 %s1758, 1.0
      %v1760 = vstv %s1759
      %v1761 = vrcp.pop %v1760
      %v1762 = vmul.f32 %v1760, %v1761
      %v1763 = vsub.f32 1.0, %v1762
      %v1764 = vmul.f32 %v1761, %v1763
      %v1765 = vadd.f32 %v1761, %v1764
      %vm1766 = vweird.f32 %v1760
      %vm1767 = vweird.f32 %v1761
      %vm1768 = vmor %vm1766, %vm1767
      %v1769 = vsel %vm1768, %v1761, %v1765
      %v1770 = vand.u32 2147483647, %v1760
      %vm1771 = vcmp.eq.f32.partialorder %v1770, 8.507059e+37
      %v1772 = vand.u32 %v1760, 2147483648
      %v1773 = vor.u32 1.1754944e-38, %v1772
      %v1774 = vsel %vm1771, %v1773, %v1769
      %v1775 = vmul.f32 %v1710, %v1774
      %v1776 = vmul.f32 %v1760, %v1775
      %v1777 = vmul.f32 %v1776, %v1775
      %v1778 = vsub.f32 %v1746, %v1777
      %s1779 = sld [smem:[#allocation3]]
      %s1780 = sadd.f32 %s1779, %s1758
      %s1781 = smax.f32 %s1780, 1.0
      %v1782 = vld [vmem:[%s5] sm:$0x1]
      %v1783 = vsub.f32 %v1775, %v1782
      %v1784 = vstv %s1781
      %v1785 = vrcp.pop %v1784
      %v1786 = vmul.f32 %v1784, %v1785
      %v1787 = vsub.f32 1.0, %v1786
      %v1788 = vmul.f32 %v1785, %v1787
      %v1789 = vadd.f32 %v1785, %v1788
      %vm1790 = vweird.f32 %v1784
      %vm1791 = vweird.f32 %v1785
      %vm1792 = vmor %vm1790, %vm1791
      %v1793 = vsel %vm1792, %v1785, %v1789
      %v1794 = vand.u32 2147483647, %v1784
      %vm1795 = vcmp.eq.f32.partialorder %v1794, 8.507059e+37
      %v1796 = vand.u32 %v1784, 2147483648
      %v1797 = vor.u32 1.1754944e-38, %v1796
      %v1798 = vsel %vm1795, %v1797, %v1793
      %s1799 = vtos %v1798
      %s1800 = smul.f32 %s1758, %s1799
      %v1801 = vstv %s1800
      %v1802 = vmul.f32 %v1783, %v1801
      %v1803 = vadd.f32 %v1782, %v1802
      %1804 = vst [vmem:[%s5] sm:$0x1] %v1803
      %v1805 = vld [vmem:[%s6] sm:$0x1]
      %v1806 = vadd.f32 %v1805, %v1778
      %v1807 = vmul.f32 %v1783, %v1783
      %s1808 = smul.f32 %s1779, %s1758
      %v1809 = vstv %s1781
      %v1810 = vrcp.pop %v1809
      %v1811 = vmul.f32 %v1809, %v1810
      %v1812 = vsub.f32 1.0, %v1811
      %v1813 = vmul.f32 %v1810, %v1812
      %v1814 = vadd.f32 %v1810, %v1813
      %vm1815 = vweird.f32 %v1809
      %vm1816 = vweird.f32 %v1810
      %vm1817 = vmor %vm1815, %vm1816
      %v1818 = vsel %vm1817, %v1810, %v1814
      %v1819 = vand.u32 2147483647, %v1809
      %vm1820 = vcmp.eq.f32.partialorder %v1819, 8.507059e+37
      %v1821 = vand.u32 %v1809, 2147483648
      %v1822 = vor.u32 1.1754944e-38, %v1821
      %v1823 = vsel %vm1820, %v1822, %v1818
      %s1824 = vtos %v1823
      %s1825 = smul.f32 %s1808, %s1824
      %v1826 = vstv %s1825
      %v1827 = vmul.f32 %v1807, %v1826
      %v1828 = vadd.f32 %v1806, %v1827
      %1829 = vst [vmem:[%s6] sm:$0x1] %v1828
      %s1830 = scalar_lea.smem [#allocation3], 0
      %1831 = sst [smem:[%s1830]] %s1780
      %s1832 = smul.u32 16, %s18
      %p1833 = scmp.lt.s32.totalorder %s1832, 95
      %s1834 = scalar_select %p1833, %s1832, 95
      %s1835 = smul.addr %s1834, 8
      %s1836 = scalar_lea.vmem %s4, %s1835
      // Predicated region
      $region41: #{cbl_forward_nhwc.2} parent=35 // pred_check
        %p1837 = pneg %p139
      $region42: #{cbl_forward_nhwc.2} parent=35 // pred_check_branch
        %1839 = sbr.rel (%p1837) target = $region44
      $region43: #{cbl_forward_nhwc.2} parent=35 // pred_region
        %s1840 = smul.u32 16, %s18
      $region44: #{cbl_forward_nhwc.2} parent=35 // pred_fallthru
        _
      // Predicated region
      $region45: #{cbl_forward_nhwc.2} parent=35 // pred_check
        %p1841 = pneg %p160
      $region46: #{cbl_forward_nhwc.2} parent=35 // pred_check_branch
        %1843 = sbr.rel (%p1841) target = $region48
      $region47: #{cbl_forward_nhwc.2} parent=35 // pred_region
        _
      $region48: #{cbl_forward_nhwc.2} parent=35 // pred_fallthru
        _
      // Predicated region
      $region49: #{cbl_forward_nhwc.2} parent=35 // pred_check
        %p1844 = pneg %p181
      $region50: #{cbl_forward_nhwc.2} parent=35 // pred_check_branch
        %1846 = sbr.rel (%p1844) target = $region52
      $region51: #{cbl_forward_nhwc.2} parent=35 // pred_region
        _
      $region52: #{cbl_forward_nhwc.2} parent=35 // pred_fallthru
        _
      // Predicated region
      $region53: #{cbl_forward_nhwc.2} parent=35 // pred_check
        %p1847 = pneg %p160
      $region54: #{cbl_forward_nhwc.2} parent=35 // pred_check_branch
        %1849 = sbr.rel (%p1847) target = $region56
      $region55: #{cbl_forward_nhwc.2} parent=35 // pred_region
        _
      $region56: #{cbl_forward_nhwc.2} parent=35 // pred_fallthru
        _
      // Predicated region
      $region57: #{cbl_forward_nhwc.2} parent=35 // pred_check
        %p1850 = pneg %p181
      $region58: #{cbl_forward_nhwc.2} parent=35 // pred_check_branch
        %1852 = sbr.rel (%p1850) target = $region60
      $region59: #{cbl_forward_nhwc.2} parent=35 // pred_region
        _
      $region60: #{cbl_forward_nhwc.2} parent=35 // pred_fallthru
        _
    $region36: #{cbl_forward_nhwc.2} parent=5 // pred_fallthru
      _
    %p1853 = scmp.le.s32.totalorder 2, %s13
    // Predicated region
    $region61: #{cbl_forward_nhwc.2} parent=5 // pred_check
      %p1854 = pneg %p1853
    $region62: #{cbl_forward_nhwc.2} parent=5 // pred_check_branch
      %1856 = sbr.rel (%p1854) target = $region64
    $region63: #{cbl_forward_nhwc.2} parent=5 // pred_region
      %s1857 = ssub.s32 %s13, 2
      // Predicated region
      $region65: #{cbl_forward_nhwc.2} parent=63 // pred_check
        %p1858 = pneg %p145
      $region66: #{cbl_forward_nhwc.2} parent=63 // pred_check_branch
        %1860 = sbr.rel (%p1858) target = $region68
      $region67: #{cbl_forward_nhwc.2} parent=63 // pred_region
        %s1861 = smul.u32 16, %s19
        %p1862 = scmp.lt.s32.totalorder %s1861, 95
        %s1863 = scalar_select %p1862, %s1861, 95
        %s1864 = smul.addr %s1863, 8
        %s1865 = scalar_lea.vmem %s4, %s1864
      $region68: #{cbl_forward_nhwc.2} parent=63 // pred_fallthru
        _
    $region64: #{cbl_forward_nhwc.2} parent=5 // pred_fallthru
      _
  $region6: #{cbl_forward_nhwc.2} parent=0 // loop_footer
    %s17 = sadd.s32 1, %s13
  $region7: #{cbl_forward_nhwc.2} parent=0 // loop_footer_branch
    %12 = sbr.rel target = $region3
  $region8: #{cbl_forward_nhwc.2} parent=0 // loop_exit
    _

</llo_original>
